<compile_context>
chip_gen: v7x
topology: tpu7x:2x2x1
jax: 0.10.0
libtpu: 0.0.40
codegen_flags: <defaults>
</compile_context>

<pallas_src>
import functools

import jax
import jax.numpy as jnp
from jax.experimental import pallas as pl
from jax.experimental.pallas import tpu as pltpu


def _bn_kernel(eps, x_ref, g_ref, b_ref, o_ref):
    # x_ref: [N, Ct, HW]   (channel tile on sublanes, spatial on lanes)
    # g_ref, b_ref: [1, Ct, 1]
    x = x_ref[...].astype(jnp.float32)
    n, _, hw = x.shape
    inv_m = 1.0 / float(n * hw)

    # Per-channel mean over (N, HW).
    s = jnp.sum(x, axis=2, keepdims=True)              # [N, Ct, 1] (lane reduce, XLU)
    mean = jnp.sum(s, axis=0, keepdims=True) * inv_m   # [1, Ct, 1]

    # Two-pass (centered) biased variance — numerically safer than E[x^2]-E[x]^2.
    d = x - mean
    sq = jnp.sum(d * d, axis=2, keepdims=True)
    var = jnp.sum(sq, axis=0, keepdims=True) * inv_m   # [1, Ct, 1]

    inv_std = jax.lax.rsqrt(var + eps)                 # EUP
    scale = inv_std * g_ref[...].astype(jnp.float32)   # [1, Ct, 1]
    shift = b_ref[...].astype(jnp.float32) - mean * scale

    # Folded affine: 2 VALU ops per element.
    o_ref[...] = (x * scale + shift).astype(o_ref.dtype)


def _pick_c_tile(c, max_tile=576):
    """Largest channel tile <= max_tile that divides C and is sublane-aligned."""
    if c <= max_tile:
        return c
    for t in range(max_tile, 7, -1):
        if c % t == 0 and t % 8 == 0:
            return t
    return c


def batchnorm2d_pallas(x_nchw, gamma, beta, eps=1e-3, c_tile=None):
    """Training-mode BatchNorm2d forward. x_nchw: [N, C, H, W]. Returns same shape."""
    n, c, h, w = x_nchw.shape
    hw = h * w

    # Metadata-only reshapes — no HBM copies, no extra kernels.
    x3 = x_nchw.reshape(n, c, hw)
    g3 = gamma.reshape(1, c, 1).astype(jnp.float32)
    b3 = beta.reshape(1, c, 1).astype(jnp.float32)

    if c_tile is None:
        c_tile = _pick_c_tile(c)
    assert c % c_tile == 0, (c, c_tile)

    kernel = functools.partial(_bn_kernel, float(eps))

    out3 = pl.pallas_call(
        kernel,
        out_shape=jax.ShapeDtypeStruct((n, c, hw), x_nchw.dtype),
        grid=(c // c_tile,),
        in_specs=[
            pl.BlockSpec((n, c_tile, hw), lambda i: (0, i, 0)),
            pl.BlockSpec((1, c_tile, 1), lambda i: (0, i, 0)),
            pl.BlockSpec((1, c_tile, 1), lambda i: (0, i, 0)),
        ],
        out_specs=pl.BlockSpec((n, c_tile, hw), lambda i: (0, i, 0)),
        compiler_params=pltpu.CompilerParams(
            dimension_semantics=("parallel",),
        ),
    )(x3, g3, b3)

    return out3.reshape(n, c, h, w)


if __name__ == "__main__":
    key = jax.random.PRNGKey(0)
    kx, ko, kg, kb = jax.random.split(key, 4)

    # Shapes from the original module: x707 = randn([1, 2304, 7, 7]).
    N, C, H, W = 1, 2304, 7, 7
    x = jax.random.normal(kx, (N, C, H, W), dtype=jnp.float32)
    # Add a per-channel offset so the centered-variance path is exercised.
    x = x + 3.0 * jax.random.normal(ko, (1, C, 1, 1), dtype=jnp.float32)

    # PyTorch default init is gamma=1, beta=0; perturb so the affine path matters.
    gamma = 1.0 + 0.1 * jax.random.normal(kg, (C,), dtype=jnp.float32)
    beta = 0.1 * jax.random.normal(kb, (C,), dtype=jnp.float32)
    eps = 1e-3

    out = jax.block_until_ready(batchnorm2d_pallas(x, gamma, beta, eps))

    # Pure-JAX reference (training-mode BatchNorm2d: biased batch statistics).
    mean = jnp.mean(x, axis=(0, 2, 3), keepdims=True)
    var = jnp.mean((x - mean) ** 2, axis=(0, 2, 3), keepdims=True)
    ref = (x - mean) / jnp.sqrt(var + eps) * gamma.reshape(1, C, 1, 1) \
        + beta.reshape(1, C, 1, 1)

    assert out.shape == (N, C, H, W)
    err = jnp.max(jnp.abs(out - ref))
    assert err < 1e-4, f"mismatch vs reference: {err}"
    print("KERNEL_OK")
</pallas_src>

<mosaic_0001>
module attributes {stable_mosaic.version = 11 : i64} {
  func.func @_bn_kernel(%arg0: i32, %arg1: memref<1x576x49xf32, #tpu.memory_space<vmem>>, %arg2: memref<1x576x1xf32, #tpu.memory_space<vmem>>, %arg3: memref<1x576x1xf32, #tpu.memory_space<vmem>>, %arg4: memref<1x576x49xf32, #tpu.memory_space<vmem>>) attributes {dimension_semantics = [#tpu.dimension_semantics<parallel>], iteration_bounds = array<i64: 4>, scalar_prefetch = 0 : i64, scratch_operands = 0 : i64, tpu.core_type = #tpu.core_type<tc>, window_params = [{transform_indices = @transform_0, window_bounds = array<i64: 1, 576, 49>}, {transform_indices = @transform_1, window_bounds = array<i64: 1, 576, 1>}, {transform_indices = @transform_2, window_bounds = array<i64: 1, 576, 1>}, {transform_indices = @transform_3, window_bounds = array<i64: 1, 576, 49>}]} {
    %c0 = arith.constant 0 : index
    %c0_0 = arith.constant 0 : index
    %c0_1 = arith.constant 0 : index
    %0 = vector.load %arg1[%c0, %c0_0, %c0_1] : memref<1x576x49xf32, #tpu.memory_space<vmem>>, vector<1x576x49xf32>
    %cst = arith.constant dense<0.000000e+00> : vector<1x576xf32>
    %1 = vector.multi_reduction <add>, %0, %cst [2] : vector<1x576x49xf32> to vector<1x576xf32>
    %2 = vector.shape_cast %1 : vector<1x576xf32> to vector<1x576x1xf32>
    %cst_2 = arith.constant dense<0.000000e+00> : vector<576x1xf32>
    %3 = vector.multi_reduction <add>, %2, %cst_2 [0] : vector<1x576x1xf32> to vector<576x1xf32>
    %4 = vector.shape_cast %3 : vector<576x1xf32> to vector<1x576x1xf32>
    %cst_3 = arith.constant 0.0204081628 : f32
    %5 = vector.broadcast %cst_3 : f32 to vector<1x576x1xf32>
    %6 = arith.mulf %4, %5 : vector<1x576x1xf32>
    %7 = vector.broadcast %6 : vector<1x576x1xf32> to vector<1x576x49xf32>
    %8 = arith.subf %0, %7 : vector<1x576x49xf32>
    %9 = arith.mulf %8, %8 : vector<1x576x49xf32>
    %cst_4 = arith.constant dense<0.000000e+00> : vector<1x576xf32>
    %10 = vector.multi_reduction <add>, %9, %cst_4 [2] : vector<1x576x49xf32> to vector<1x576xf32>
    %11 = vector.shape_cast %10 : vector<1x576xf32> to vector<1x576x1xf32>
    %cst_5 = arith.constant dense<0.000000e+00> : vector<576x1xf32>
    %12 = vector.multi_reduction <add>, %11, %cst_5 [0] : vector<1x576x1xf32> to vector<576x1xf32>
    %13 = vector.shape_cast %12 : vector<576x1xf32> to vector<1x576x1xf32>
    %cst_6 = arith.constant 0.0204081628 : f32
    %14 = vector.broadcast %cst_6 : f32 to vector<1x576x1xf32>
    %15 = arith.mulf %13, %14 : vector<1x576x1xf32>
    %cst_7 = arith.constant 1.000000e-03 : f32
    %16 = vector.broadcast %cst_7 : f32 to vector<1x576x1xf32>
    %17 = arith.addf %15, %16 : vector<1x576x1xf32>
    %18 = math.rsqrt %17 : vector<1x576x1xf32>
    %c0_8 = arith.constant 0 : index
    %c0_9 = arith.constant 0 : index
    %c0_10 = arith.constant 0 : index
    %19 = vector.load %arg2[%c0_8, %c0_9, %c0_10] : memref<1x576x1xf32, #tpu.memory_space<vmem>>, vector<1x576x1xf32>
    %20 = arith.mulf %18, %19 : vector<1x576x1xf32>
    %c0_11 = arith.constant 0 : index
    %c0_12 = arith.constant 0 : index
    %c0_13 = arith.constant 0 : index
    %21 = vector.load %arg3[%c0_11, %c0_12, %c0_13] : memref<1x576x1xf32, #tpu.memory_space<vmem>>, vector<1x576x1xf32>
    %22 = arith.mulf %6, %20 : vector<1x576x1xf32>
    %23 = arith.subf %21, %22 : vector<1x576x1xf32>
    %24 = vector.broadcast %20 : vector<1x576x1xf32> to vector<1x576x49xf32>
    %25 = arith.mulf %0, %24 : vector<1x576x49xf32>
    %26 = vector.broadcast %23 : vector<1x576x1xf32> to vector<1x576x49xf32>
    %27 = arith.addf %25, %26 : vector<1x576x49xf32>
    %c0_14 = arith.constant 0 : index
    %c0_15 = arith.constant 0 : index
    %c0_16 = arith.constant 0 : index
    %28 = vector.load %arg4[%c0_14, %c0_15, %c0_16] : memref<1x576x49xf32, #tpu.memory_space<vmem>>, vector<1x576x49xf32>
    tpu.vector_store %arg4[%c0_14, %c0_15, %c0_16], %27 {strides = array<i32>} : memref<1x576x49xf32, #tpu.memory_space<vmem>>, vector<1x576x49xf32>,
    return
  }
  func.func @transform_0(%arg0: i32) -> (i32, i32, i32) {
    %c0_i32 = arith.constant 0 : i32
    %c0_i32_0 = arith.constant 0 : i32
    %c0_i32_1 = arith.constant 0 : i32
    return %c0_i32, %arg0, %c0_i32_0 : i32, i32, i32
  }
  func.func @transform_1(%arg0: i32) -> (i32, i32, i32) {
    %c0_i32 = arith.constant 0 : i32
    %c0_i32_0 = arith.constant 0 : i32
    %c0_i32_1 = arith.constant 0 : i32
    return %c0_i32, %arg0, %c0_i32_0 : i32, i32, i32
  }
  func.func @transform_2(%arg0: i32) -> (i32, i32, i32) {
    %c0_i32 = arith.constant 0 : i32
    %c0_i32_0 = arith.constant 0 : i32
    %c0_i32_1 = arith.constant 0 : i32
    return %c0_i32, %arg0, %c0_i32_0 : i32, i32, i32
  }
  func.func @transform_3(%arg0: i32) -> (i32, i32, i32) {
    %c0_i32 = arith.constant 0 : i32
    %c0_i32_0 = arith.constant 0 : i32
    %c0_i32_1 = arith.constant 0 : i32
    return %c0_i32, %arg0, %c0_i32_0 : i32, i32, i32
  }
}

</mosaic_0001>

<llo_original>
// kernel: tpu_custom_call.1
$region0: #{tpu_custom_call.1}
  #allocation0 [shape = 'u32[]', space=smem, size = 0x4, offset = 0x4, fixed_abs, tag = 'smem constant byte address 0x4 - core index']
  #allocation1 [shape = 'u32[144,128]{1,0:T(1,128)}', space=vmem, size = 0x12000, scoped, tag = 'internal scratch']
  %s0 = inlined_call_operand.vmem [shape: f32[1,2304,49], index: 0, kind: input, shape index: {}]
  %s1 = inlined_call_operand.vmem [shape: f32[1,2304,1], index: 1, kind: input, shape index: {}]
  %s2 = inlined_call_operand.vmem [shape: f32[1,2304,1], index: 2, kind: input, shape index: {}]
  %s3 = inlined_call_operand.vmem [shape: f32[1,2304,49], index: 3, kind: output, shape index: {}]
  %s4 = sld [smem:[#allocation0]]
  $region45: #{tpu_custom_call.1} parent=0
    _
  %s6 = ssub.s32 1, %s4
  %s7 = scalar_select 0, %s6, %s4
  loop: start=0, step=1, limit=6
  $region2: #{tpu_custom_call.1} parent=0 // loop_pre_header
    _
  $region3: #{tpu_custom_call.1} parent=0 // loop_header
    %s9 = sphi 0, %s13
    %p10 = scmp.ge.s32.totalorder %s9, 6
    %s19 = sphi 0, %s21
    %s22 = sphi 0, %s19
    %s23 = sphi 0, %s22
    %s39 = sphi 0, %s23
    %s45 = sphi 0, %s47
    %s48 = sphi 0, %s45
    %s49 = sphi 0, %s48
    %s65 = sphi 0, %s49
    %s71 = sphi 0, %s73
    %s74 = sphi 0, %s71
    %s75 = sphi 0, %s74
    %s91 = sphi 0, %s75
    %s97 = sphi 0, %s99
    %s100 = sphi 0, %s97
    %s101 = sphi 0, %s100
    %s117 = sphi 0, %s101
  $region4: #{tpu_custom_call.1} parent=0 // loop_header_branch
    %12 = sbr.rel (%p10) target = $region8
  $region5: #{tpu_custom_call.1} parent=0 // loop_body
    %s14 = ssub.s32 %s9, 1
    %s15 = ssub.s32 %s9, 2
    %s16 = sadd.s32 %s9, 1
    %s17 = ssub.s32 %s9, %s16
    %p18 = scmp.eq.s32.totalorder %s17, 0
    %s20 = sadd.s32 %s19, 1
    %s21 = scalar_select %p18, %s19, %s20
    %p24 = pneg %p18
    %p25 = scmp.eq.s32.totalorder %s9, 3
    %p26 = por %p24, %p25
    %p27 = scmp.ne.s32.totalorder %s19, %s22
    %p28 = scmp.eq.s32.totalorder %s9, 0
    %p29 = por %p27, %p28
    %p30 = scmp.ne.s32.totalorder %s19, %s22
    %p31 = scmp.eq.s32.totalorder %s14, 3
    %p32 = por %p30, %p31
    %p33 = scmp.ne.s32.totalorder %s22, %s23
    %p34 = scmp.eq.s32.totalorder %s14, 0
    %p35 = por %p33, %p34
    %p36 = scmp.ne.s32.totalorder %s22, %s23
    %p37 = scmp.eq.s32.totalorder %s15, 3
    %p38 = por %p36, %p37
    %p40 = scmp.ne.s32.totalorder %s23, %s39
    %p41 = scmp.eq.s32.totalorder %s15, 0
    %p42 = por %p40, %p41
    %s43 = ssub.s32 %s9, %s16
    %p44 = scmp.eq.s32.totalorder %s43, 0
    %s46 = sadd.s32 %s45, 1
    %s47 = scalar_select %p44, %s45, %s46
    %p50 = pneg %p44
    %p51 = scmp.eq.s32.totalorder %s9, 3
    %p52 = por %p50, %p51
    %p53 = scmp.ne.s32.totalorder %s45, %s48
    %p54 = scmp.eq.s32.totalorder %s9, 0
    %p55 = por %p53, %p54
    %p56 = scmp.ne.s32.totalorder %s45, %s48
    %p57 = scmp.eq.s32.totalorder %s14, 3
    %p58 = por %p56, %p57
    %p59 = scmp.ne.s32.totalorder %s48, %s49
    %p60 = scmp.eq.s32.totalorder %s14, 0
    %p61 = por %p59, %p60
    %p62 = scmp.ne.s32.totalorder %s48, %s49
    %p63 = scmp.eq.s32.totalorder %s15, 3
    %p64 = por %p62, %p63
    %p66 = scmp.ne.s32.totalorder %s49, %s65
    %p67 = scmp.eq.s32.totalorder %s15, 0
    %p68 = por %p66, %p67
    %s69 = ssub.s32 %s9, %s16
    %p70 = scmp.eq.s32.totalorder %s69, 0
    %s72 = sadd.s32 %s71, 1
    %s73 = scalar_select %p70, %s71, %s72
    %p76 = pneg %p70
    %p77 = scmp.eq.s32.totalorder %s9, 3
    %p78 = por %p76, %p77
    %p79 = scmp.ne.s32.totalorder %s71, %s74
    %p80 = scmp.eq.s32.totalorder %s9, 0
    %p81 = por %p79, %p80
    %p82 = scmp.ne.s32.totalorder %s71, %s74
    %p83 = scmp.eq.s32.totalorder %s14, 3
    %p84 = por %p82, %p83
    %p85 = scmp.ne.s32.totalorder %s74, %s75
    %p86 = scmp.eq.s32.totalorder %s14, 0
    %p87 = por %p85, %p86
    %p88 = scmp.ne.s32.totalorder %s74, %s75
    %p89 = scmp.eq.s32.totalorder %s15, 3
    %p90 = por %p88, %p89
    %p92 = scmp.ne.s32.totalorder %s75, %s91
    %p93 = scmp.eq.s32.totalorder %s15, 0
    %p94 = por %p92, %p93
    %s95 = ssub.s32 %s9, %s16
    %p96 = scmp.eq.s32.totalorder %s95, 0
    %s98 = sadd.s32 %s97, 1
    %s99 = scalar_select %p96, %s97, %s98
    %p102 = pneg %p96
    %p103 = scmp.eq.s32.totalorder %s9, 3
    %p104 = por %p102, %p103
    %p105 = scmp.ne.s32.totalorder %s97, %s100
    %p106 = scmp.eq.s32.totalorder %s9, 0
    %p107 = por %p105, %p106
    %p108 = scmp.ne.s32.totalorder %s97, %s100
    %p109 = scmp.eq.s32.totalorder %s14, 3
    %p110 = por %p108, %p109
    %p111 = scmp.ne.s32.totalorder %s100, %s101
    %p112 = scmp.eq.s32.totalorder %s14, 0
    %p113 = por %p111, %p112
    %p114 = scmp.ne.s32.totalorder %s100, %s101
    %p115 = scmp.eq.s32.totalorder %s15, 3
    %p116 = por %p114, %p115
    %p118 = scmp.ne.s32.totalorder %s101, %s117
    %p119 = scmp.eq.s32.totalorder %s15, 0
    %p120 = por %p118, %p119
    %p121 = scmp.le.s32.totalorder 1, %s9
    %p122 = scmp.lt.s32.totalorder %s9, 5
    %p123 = pnand %p121, %p122
    %p124 = pneg %p123
    // Predicated region
    $region9: #{tpu_custom_call.1} parent=5 // pred_check
      _
    $region10: #{tpu_custom_call.1} parent=5 // pred_check_branch
      %126 = sbr.rel (%p123) target = $region12
    $region11: #{tpu_custom_call.1} parent=5 // pred_region
      %s127 = ssub.s32 %s9, 1
    $region12: #{tpu_custom_call.1} parent=5 // pred_fallthru
      _
    %p128 = scmp.lt.s32.totalorder %s9, 4
    // Predicated region
    $region13: #{tpu_custom_call.1} parent=5 // pred_check
      %p129 = pneg %p128
    $region14: #{tpu_custom_call.1} parent=5 // pred_check_branch
      %131 = sbr.rel (%p129) target = $region16
    $region15: #{tpu_custom_call.1} parent=5 // pred_region
      // Predicated region
      $region17: #{tpu_custom_call.1} parent=15 // pred_check
        %p132 = pneg %p29
      $region18: #{tpu_custom_call.1} parent=15 // pred_check_branch
        %134 = sbr.rel (%p132) target = $region20
      $region19: #{tpu_custom_call.1} parent=15 // pred_region
        %s135 = smul.u32 72, %s9
        %p136 = scmp.lt.s32.totalorder %s135, 287
        %s137 = scalar_select %p136, %s135, 287
        %s138 = smul.addr %s137, 8
        %s139 = scalar_lea.vmem %s0, %s138
        %s140 = smul.u32 72, %s9
      $region20: #{tpu_custom_call.1} parent=15 // pred_fallthru
        _
      // Predicated region
      $region21: #{tpu_custom_call.1} parent=15 // pred_check
        %p141 = pneg %p55
      $region22: #{tpu_custom_call.1} parent=15 // pred_check_branch
        %143 = sbr.rel (%p141) target = $region24
      $region23: #{tpu_custom_call.1} parent=15 // pred_region
        %s144 = smul.u32 72, %s9
        %p145 = scmp.lt.s32.totalorder %s144, 287
        %s146 = scalar_select %p145, %s144, 287
        %s147 = smul.addr %s146, 8
        %s148 = scalar_lea.vmem %s1, %s147
        %s149 = smul.u32 72, %s9
      $region24: #{tpu_custom_call.1} parent=15 // pred_fallthru
        _
      // Predicated region
      $region25: #{tpu_custom_call.1} parent=15 // pred_check
        %p150 = pneg %p81
      $region26: #{tpu_custom_call.1} parent=15 // pred_check_branch
        %152 = sbr.rel (%p150) target = $region28
      $region27: #{tpu_custom_call.1} parent=15 // pred_region
        %s153 = smul.u32 72, %s9
        %p154 = scmp.lt.s32.totalorder %s153, 287
        %s155 = scalar_select %p154, %s153, 287
        %s156 = smul.addr %s155, 8
        %s157 = scalar_lea.vmem %s2, %s156
        %s158 = smul.u32 72, %s9
      $region28: #{tpu_custom_call.1} parent=15 // pred_fallthru
        _
    $region16: #{tpu_custom_call.1} parent=5 // pred_fallthru
      _
    %p159 = scmp.le.s32.totalorder 1, %s9
    %p160 = scmp.lt.s32.totalorder %s9, 5
    %p161 = pnand %p159, %p160
    %p162 = pneg %p161
    // Predicated region
    $region29: #{tpu_custom_call.1} parent=5 // pred_check
      _
    $region30: #{tpu_custom_call.1} parent=5 // pred_check_branch
      %164 = sbr.rel (%p161) target = $region32
    $region31: #{tpu_custom_call.1} parent=5 // pred_region
      %s165 = ssub.s32 %s9, 1
      %s166 = smul.u32 72, %s14
      %p167 = scmp.lt.s32.totalorder %s166, 287
      %s168 = scalar_select %p167, %s166, 287
      %s169 = smul.addr %s168, 8
      %s170 = scalar_lea.vmem %s0, %s169
      %p171 = pneg %p35
      %p172 = pneg %p32
      %s173 = smul.u32 72, %s14
      %p174 = scmp.lt.s32.totalorder %s173, 287
      %s175 = scalar_select %p174, %s173, 287
      %s176 = smul.addr %s175, 8
      %s177 = scalar_lea.vmem %s1, %s176
      %p178 = pneg %p61
      %p179 = pneg %p58
      %s180 = smul.u32 72, %s14
      %p181 = scmp.lt.s32.totalorder %s180, 287
      %s182 = scalar_select %p181, %s180, 287
      %s183 = smul.addr %s182, 8
      %s184 = scalar_lea.vmem %s2, %s183
      %p185 = pneg %p87
      %p186 = pneg %p84
      %p187 = pneg %p113
      %p188 = pneg %p110
      %s189 = smul.u32 72, %s14
      %p190 = scmp.lt.s32.totalorder %s189, 287
      %s191 = scalar_select %p190, %s189, 287
      %s192 = smul.addr %s191, 8
      %s193 = scalar_lea.vmem %s3, %s192
      %s194 = smul.u32 72, %s14
      %p195 = scmp.lt.s32.totalorder %s194, 287
      %s196 = scalar_select %p195, %s194, 287
      %s197 = smul.addr %s196, 8
      %s198 = scalar_lea.vmem %s0, %s197
      %s199 = smul.u32 72, %s14
      %s200 = smul.u32 72, %s14
      %p201 = scmp.lt.s32.totalorder %s200, 287
      %s202 = scalar_select %p201, %s200, 287
      %s203 = smul.addr %s202, 8
      %s204 = scalar_lea.vmem %s1, %s203
      %s205 = smul.u32 72, %s14
      %s206 = smul.u32 72, %s14
      %p207 = scmp.lt.s32.totalorder %s206, 287
      %s208 = scalar_select %p207, %s206, 287
      %s209 = smul.addr %s208, 8
      %s210 = scalar_lea.vmem %s2, %s209
      %s211 = smul.u32 72, %s14
      %s212 = smul.u32 72, %s14
      %p213 = scmp.lt.s32.totalorder %s212, 287
      %s214 = scalar_select %p213, %s212, 287
      %s215 = smul.addr %s214, 8
      %s216 = scalar_lea.vmem %s3, %s215
      %s217 = smul.u32 72, %s14
      %v218 = vld [vmem:[%s198] sm:$0xff]
      %v219 = vld [vmem:[%s198 + $0x8] sm:$0xff]
      %v220 = vld [vmem:[%s198 + $0x10] sm:$0xff]
      %v221 = vld [vmem:[%s198 + $0x18] sm:$0xff]
      %v222 = vld [vmem:[%s198 + $0x20] sm:$0xff]
      %v223 = vld [vmem:[%s198 + $0x28] sm:$0xff]
      %v224 = vld [vmem:[%s198 + $0x30] sm:$0xff]
      %v225 = vld [vmem:[%s198 + $0x38] sm:$0xff]
      %v226 = vld [vmem:[%s198 + $0x40] sm:$0xff]
      %v227 = vld [vmem:[%s198 + $0x48] sm:$0xff]
      %v228 = vld [vmem:[%s198 + $0x50] sm:$0xff]
      %v229 = vld [vmem:[%s198 + $0x58] sm:$0xff]
      %v230 = vld [vmem:[%s198 + $0x60] sm:$0xff]
      %v231 = vld [vmem:[%s198 + $0x68] sm:$0xff]
      %v232 = vld [vmem:[%s198 + $0x70] sm:$0xff]
      %v233 = vld [vmem:[%s198 + $0x78] sm:$0xff]
      %v234 = vld [vmem:[%s198 + $0x80] sm:$0xff]
      %v235 = vld [vmem:[%s198 + $0x88] sm:$0xff]
      %v236 = vld [vmem:[%s198 + $0x90] sm:$0xff]
      %v237 = vld [vmem:[%s198 + $0x98] sm:$0xff]
      %v238 = vld [vmem:[%s198 + $0xa0] sm:$0xff]
      %v239 = vld [vmem:[%s198 + $0xa8] sm:$0xff]
      %v240 = vld [vmem:[%s198 + $0xb0] sm:$0xff]
      %v241 = vld [vmem:[%s198 + $0xb8] sm:$0xff]
      %v242 = vld [vmem:[%s198 + $0xc0] sm:$0xff]
      %v243 = vld [vmem:[%s198 + $0xc8] sm:$0xff]
      %v244 = vld [vmem:[%s198 + $0xd0] sm:$0xff]
      %v245 = vld [vmem:[%s198 + $0xd8] sm:$0xff]
      %v246 = vld [vmem:[%s198 + $0xe0] sm:$0xff]
      %v247 = vld [vmem:[%s198 + $0xe8] sm:$0xff]
      %v248 = vld [vmem:[%s198 + $0xf0] sm:$0xff]
      %v249 = vld [vmem:[%s198 + $0xf8] sm:$0xff]
      %v250 = vld [vmem:[%s198 + $0x100] sm:$0xff]
      %v251 = vld [vmem:[%s198 + $0x108] sm:$0xff]
      %v252 = vld [vmem:[%s198 + $0x110] sm:$0xff]
      %v253 = vld [vmem:[%s198 + $0x118] sm:$0xff]
      %v254 = vld [vmem:[%s198 + $0x120] sm:$0xff]
      %v255 = vld [vmem:[%s198 + $0x128] sm:$0xff]
      %v256 = vld [vmem:[%s198 + $0x130] sm:$0xff]
      %v257 = vld [vmem:[%s198 + $0x138] sm:$0xff]
      %v258 = vld [vmem:[%s198 + $0x140] sm:$0xff]
      %v259 = vld [vmem:[%s198 + $0x148] sm:$0xff]
      %v260 = vld [vmem:[%s198 + $0x150] sm:$0xff]
      %v261 = vld [vmem:[%s198 + $0x158] sm:$0xff]
      %v262 = vld [vmem:[%s198 + $0x160] sm:$0xff]
      %v263 = vld [vmem:[%s198 + $0x168] sm:$0xff]
      %v264 = vld [vmem:[%s198 + $0x170] sm:$0xff]
      %v265 = vld [vmem:[%s198 + $0x178] sm:$0xff]
      %v266 = vld [vmem:[%s198 + $0x180] sm:$0xff]
      %v267 = vld [vmem:[%s198 + $0x188] sm:$0xff]
      %v268 = vld [vmem:[%s198 + $0x190] sm:$0xff]
      %v269 = vld [vmem:[%s198 + $0x198] sm:$0xff]
      %v270 = vld [vmem:[%s198 + $0x1a0] sm:$0xff]
      %v271 = vld [vmem:[%s198 + $0x1a8] sm:$0xff]
      %v272 = vld [vmem:[%s198 + $0x1b0] sm:$0xff]
      %v273 = vld [vmem:[%s198 + $0x1b8] sm:$0xff]
      %v274 = vld [vmem:[%s198 + $0x1c0] sm:$0xff]
      %v275 = vld [vmem:[%s198 + $0x1c8] sm:$0xff]
      %v276 = vld [vmem:[%s198 + $0x1d0] sm:$0xff]
      %v277 = vld [vmem:[%s198 + $0x1d8] sm:$0xff]
      %v278 = vld [vmem:[%s198 + $0x1e0] sm:$0xff]
      %v279 = vld [vmem:[%s198 + $0x1e8] sm:$0xff]
      %v280 = vld [vmem:[%s198 + $0x1f0] sm:$0xff]
      %v281 = vld [vmem:[%s198 + $0x1f8] sm:$0xff]
      %v282 = vld [vmem:[%s198 + $0x200] sm:$0xff]
      %v283 = vld [vmem:[%s198 + $0x208] sm:$0xff]
      %v284 = vld [vmem:[%s198 + $0x210] sm:$0xff]
      %v285 = vld [vmem:[%s198 + $0x218] sm:$0xff]
      %v286 = vld [vmem:[%s198 + $0x220] sm:$0xff]
      %v287 = vld [vmem:[%s198 + $0x228] sm:$0xff]
      %v288 = vld [vmem:[%s198 + $0x230] sm:$0xff]
      %v289 = vld [vmem:[%s198 + $0x238] sm:$0xff]
      %vm290 = vcmask 400384
      %v291 = vsel %vm290, %v218, 0.0
      %292 = vadd.xlane.f32.xlu0 %v291
      %v293 = vpop.xlane.xlu0 %292
      %v294 = vsel %vm290, %v219, 0.0
      %295 = vadd.xlane.f32.xlu0 %v294
      %v296 = vpop.xlane.xlu0 %295
      %v297 = vsel %vm290, %v220, 0.0
      %298 = vadd.xlane.f32.xlu0 %v297
      %v299 = vpop.xlane.xlu0 %298
      %v300 = vsel %vm290, %v221, 0.0
      %301 = vadd.xlane.f32.xlu0 %v300
      %v302 = vpop.xlane.xlu0 %301
      %v303 = vsel %vm290, %v222, 0.0
      %304 = vadd.xlane.f32.xlu0 %v303
      %v305 = vpop.xlane.xlu0 %304
      %v306 = vsel %vm290, %v223, 0.0
      %307 = vadd.xlane.f32.xlu0 %v306
      %v308 = vpop.xlane.xlu0 %307
      %v309 = vsel %vm290, %v224, 0.0
      %310 = vadd.xlane.f32.xlu0 %v309
      %v311 = vpop.xlane.xlu0 %310
      %v312 = vsel %vm290, %v225, 0.0
      %313 = vadd.xlane.f32.xlu0 %v312
      %v314 = vpop.xlane.xlu0 %313
      %v315 = vsel %vm290, %v226, 0.0
      %316 = vadd.xlane.f32.xlu0 %v315
      %v317 = vpop.xlane.xlu0 %316
      %v318 = vsel %vm290, %v227, 0.0
      %319 = vadd.xlane.f32.xlu0 %v318
      %v320 = vpop.xlane.xlu0 %319
      %v321 = vsel %vm290, %v228, 0.0
      %322 = vadd.xlane.f32.xlu0 %v321
      %v323 = vpop.xlane.xlu0 %322
      %v324 = vsel %vm290, %v229, 0.0
      %325 = vadd.xlane.f32.xlu0 %v324
      %v326 = vpop.xlane.xlu0 %325
      %v327 = vsel %vm290, %v230, 0.0
      %328 = vadd.xlane.f32.xlu0 %v327
      %v329 = vpop.xlane.xlu0 %328
      %v330 = vsel %vm290, %v231, 0.0
      %331 = vadd.xlane.f32.xlu0 %v330
      %v332 = vpop.xlane.xlu0 %331
      %v333 = vsel %vm290, %v232, 0.0
      %334 = vadd.xlane.f32.xlu0 %v333
      %v335 = vpop.xlane.xlu0 %334
      %v336 = vsel %vm290, %v233, 0.0
      %337 = vadd.xlane.f32.xlu0 %v336
      %v338 = vpop.xlane.xlu0 %337
      %v339 = vsel %vm290, %v234, 0.0
      %340 = vadd.xlane.f32.xlu0 %v339
      %v341 = vpop.xlane.xlu0 %340
      %v342 = vsel %vm290, %v235, 0.0
      %343 = vadd.xlane.f32.xlu0 %v342
      %v344 = vpop.xlane.xlu0 %343
      %v345 = vsel %vm290, %v236, 0.0
      %346 = vadd.xlane.f32.xlu0 %v345
      %v347 = vpop.xlane.xlu0 %346
      %v348 = vsel %vm290, %v237, 0.0
      %349 = vadd.xlane.f32.xlu0 %v348
      %v350 = vpop.xlane.xlu0 %349
      %v351 = vsel %vm290, %v238, 0.0
      %352 = vadd.xlane.f32.xlu0 %v351
      %v353 = vpop.xlane.xlu0 %352
      %v354 = vsel %vm290, %v239, 0.0
      %355 = vadd.xlane.f32.xlu0 %v354
      %v356 = vpop.xlane.xlu0 %355
      %v357 = vsel %vm290, %v240, 0.0
      %358 = vadd.xlane.f32.xlu0 %v357
      %v359 = vpop.xlane.xlu0 %358
      %v360 = vsel %vm290, %v241, 0.0
      %361 = vadd.xlane.f32.xlu0 %v360
      %v362 = vpop.xlane.xlu0 %361
      %v363 = vsel %vm290, %v242, 0.0
      %364 = vadd.xlane.f32.xlu0 %v363
      %v365 = vpop.xlane.xlu0 %364
      %v366 = vsel %vm290, %v243, 0.0
      %367 = vadd.xlane.f32.xlu0 %v366
      %v368 = vpop.xlane.xlu0 %367
      %v369 = vsel %vm290, %v244, 0.0
      %370 = vadd.xlane.f32.xlu0 %v369
      %v371 = vpop.xlane.xlu0 %370
      %v372 = vsel %vm290, %v245, 0.0
      %373 = vadd.xlane.f32.xlu0 %v372
      %v374 = vpop.xlane.xlu0 %373
      %v375 = vsel %vm290, %v246, 0.0
      %376 = vadd.xlane.f32.xlu0 %v375
      %v377 = vpop.xlane.xlu0 %376
      %v378 = vsel %vm290, %v247, 0.0
      %379 = vadd.xlane.f32.xlu0 %v378
      %v380 = vpop.xlane.xlu0 %379
      %v381 = vsel %vm290, %v248, 0.0
      %382 = vadd.xlane.f32.xlu0 %v381
      %v383 = vpop.xlane.xlu0 %382
      %v384 = vsel %vm290, %v249, 0.0
      %385 = vadd.xlane.f32.xlu0 %v384
      %v386 = vpop.xlane.xlu0 %385
      %v387 = vsel %vm290, %v250, 0.0
      %388 = vadd.xlane.f32.xlu0 %v387
      %v389 = vpop.xlane.xlu0 %388
      %v390 = vsel %vm290, %v251, 0.0
      %391 = vadd.xlane.f32.xlu0 %v390
      %v392 = vpop.xlane.xlu0 %391
      %v393 = vsel %vm290, %v252, 0.0
      %394 = vadd.xlane.f32.xlu0 %v393
      %v395 = vpop.xlane.xlu0 %394
      %v396 = vsel %vm290, %v253, 0.0
      %397 = vadd.xlane.f32.xlu0 %v396
      %v398 = vpop.xlane.xlu0 %397
      %v399 = vsel %vm290, %v254, 0.0
      %400 = vadd.xlane.f32.xlu0 %v399
      %v401 = vpop.xlane.xlu0 %400
      %v402 = vsel %vm290, %v255, 0.0
      %403 = vadd.xlane.f32.xlu0 %v402
      %v404 = vpop.xlane.xlu0 %403
      %v405 = vsel %vm290, %v256, 0.0
      %406 = vadd.xlane.f32.xlu0 %v405
      %v407 = vpop.xlane.xlu0 %406
      %v408 = vsel %vm290, %v257, 0.0
      %409 = vadd.xlane.f32.xlu0 %v408
      %v410 = vpop.xlane.xlu0 %409
      %v411 = vsel %vm290, %v258, 0.0
      %412 = vadd.xlane.f32.xlu0 %v411
      %v413 = vpop.xlane.xlu0 %412
      %v414 = vsel %vm290, %v259, 0.0
      %415 = vadd.xlane.f32.xlu0 %v414
      %v416 = vpop.xlane.xlu0 %415
      %v417 = vsel %vm290, %v260, 0.0
      %418 = vadd.xlane.f32.xlu0 %v417
      %v419 = vpop.xlane.xlu0 %418
      %v420 = vsel %vm290, %v261, 0.0
      %421 = vadd.xlane.f32.xlu0 %v420
      %v422 = vpop.xlane.xlu0 %421
      %v423 = vsel %vm290, %v262, 0.0
      %424 = vadd.xlane.f32.xlu0 %v423
      %v425 = vpop.xlane.xlu0 %424
      %v426 = vsel %vm290, %v263, 0.0
      %427 = vadd.xlane.f32.xlu0 %v426
      %v428 = vpop.xlane.xlu0 %427
      %v429 = vsel %vm290, %v264, 0.0
      %430 = vadd.xlane.f32.xlu0 %v429
      %v431 = vpop.xlane.xlu0 %430
      %v432 = vsel %vm290, %v265, 0.0
      %433 = vadd.xlane.f32.xlu0 %v432
      %v434 = vpop.xlane.xlu0 %433
      %v435 = vsel %vm290, %v266, 0.0
      %436 = vadd.xlane.f32.xlu0 %v435
      %v437 = vpop.xlane.xlu0 %436
      %v438 = vsel %vm290, %v267, 0.0
      %439 = vadd.xlane.f32.xlu0 %v438
      %v440 = vpop.xlane.xlu0 %439
      %v441 = vsel %vm290, %v268, 0.0
      %442 = vadd.xlane.f32.xlu0 %v441
      %v443 = vpop.xlane.xlu0 %442
      %v444 = vsel %vm290, %v269, 0.0
      %445 = vadd.xlane.f32.xlu0 %v444
      %v446 = vpop.xlane.xlu0 %445
      %v447 = vsel %vm290, %v270, 0.0
      %448 = vadd.xlane.f32.xlu0 %v447
      %v449 = vpop.xlane.xlu0 %448
      %v450 = vsel %vm290, %v271, 0.0
      %451 = vadd.xlane.f32.xlu0 %v450
      %v452 = vpop.xlane.xlu0 %451
      %v453 = vsel %vm290, %v272, 0.0
      %454 = vadd.xlane.f32.xlu0 %v453
      %v455 = vpop.xlane.xlu0 %454
      %v456 = vsel %vm290, %v273, 0.0
      %457 = vadd.xlane.f32.xlu0 %v456
      %v458 = vpop.xlane.xlu0 %457
      %v459 = vsel %vm290, %v274, 0.0
      %460 = vadd.xlane.f32.xlu0 %v459
      %v461 = vpop.xlane.xlu0 %460
      %v462 = vsel %vm290, %v275, 0.0
      %463 = vadd.xlane.f32.xlu0 %v462
      %v464 = vpop.xlane.xlu0 %463
      %v465 = vsel %vm290, %v276, 0.0
      %466 = vadd.xlane.f32.xlu0 %v465
      %v467 = vpop.xlane.xlu0 %466
      %v468 = vsel %vm290, %v277, 0.0
      %469 = vadd.xlane.f32.xlu0 %v468
      %v470 = vpop.xlane.xlu0 %469
      %v471 = vsel %vm290, %v278, 0.0
      %472 = vadd.xlane.f32.xlu0 %v471
      %v473 = vpop.xlane.xlu0 %472
      %v474 = vsel %vm290, %v279, 0.0
      %475 = vadd.xlane.f32.xlu0 %v474
      %v476 = vpop.xlane.xlu0 %475
      %v477 = vsel %vm290, %v280, 0.0
      %478 = vadd.xlane.f32.xlu0 %v477
      %v479 = vpop.xlane.xlu0 %478
      %v480 = vsel %vm290, %v281, 0.0
      %481 = vadd.xlane.f32.xlu0 %v480
      %v482 = vpop.xlane.xlu0 %481
      %v483 = vsel %vm290, %v282, 0.0
      %484 = vadd.xlane.f32.xlu0 %v483
      %v485 = vpop.xlane.xlu0 %484
      %v486 = vsel %vm290, %v283, 0.0
      %487 = vadd.xlane.f32.xlu0 %v486
      %v488 = vpop.xlane.xlu0 %487
      %v489 = vsel %vm290, %v284, 0.0
      %490 = vadd.xlane.f32.xlu0 %v489
      %v491 = vpop.xlane.xlu0 %490
      %v492 = vsel %vm290, %v285, 0.0
      %493 = vadd.xlane.f32.xlu0 %v492
      %v494 = vpop.xlane.xlu0 %493
      %v495 = vsel %vm290, %v286, 0.0
      %496 = vadd.xlane.f32.xlu0 %v495
      %v497 = vpop.xlane.xlu0 %496
      %v498 = vsel %vm290, %v287, 0.0
      %499 = vadd.xlane.f32.xlu0 %v498
      %v500 = vpop.xlane.xlu0 %499
      %v501 = vsel %vm290, %v288, 0.0
      %502 = vadd.xlane.f32.xlu0 %v501
      %v503 = vpop.xlane.xlu0 %502
      %v504 = vsel %vm290, %v289, 0.0
      %505 = vadd.xlane.f32.xlu0 %v504
      %v506 = vpop.xlane.xlu0 %505
      %v507 = vadd.f32 %v293, 0.0
      %v508 = vadd.f32 %v296, 0.0
      %v509 = vadd.f32 %v299, 0.0
      %v510 = vadd.f32 %v302, 0.0
      %v511 = vadd.f32 %v305, 0.0
      %v512 = vadd.f32 %v308, 0.0
      %v513 = vadd.f32 %v311, 0.0
      %v514 = vadd.f32 %v314, 0.0
      %v515 = vadd.f32 %v317, 0.0
      %v516 = vadd.f32 %v320, 0.0
      %v517 = vadd.f32 %v323, 0.0
      %v518 = vadd.f32 %v326, 0.0
      %v519 = vadd.f32 %v329, 0.0
      %v520 = vadd.f32 %v332, 0.0
      %v521 = vadd.f32 %v335, 0.0
      %v522 = vadd.f32 %v338, 0.0
      %v523 = vadd.f32 %v341, 0.0
      %v524 = vadd.f32 %v344, 0.0
      %v525 = vadd.f32 %v347, 0.0
      %v526 = vadd.f32 %v350, 0.0
      %v527 = vadd.f32 %v353, 0.0
      %v528 = vadd.f32 %v356, 0.0
      %v529 = vadd.f32 %v359, 0.0
      %v530 = vadd.f32 %v362, 0.0
      %v531 = vadd.f32 %v365, 0.0
      %v532 = vadd.f32 %v368, 0.0
      %v533 = vadd.f32 %v371, 0.0
      %v534 = vadd.f32 %v374, 0.0
      %v535 = vadd.f32 %v377, 0.0
      %v536 = vadd.f32 %v380, 0.0
      %v537 = vadd.f32 %v383, 0.0
      %v538 = vadd.f32 %v386, 0.0
      %v539 = vadd.f32 %v389, 0.0
      %v540 = vadd.f32 %v392, 0.0
      %v541 = vadd.f32 %v395, 0.0
      %v542 = vadd.f32 %v398, 0.0
      %v543 = vadd.f32 %v401, 0.0
      %v544 = vadd.f32 %v404, 0.0
      %v545 = vadd.f32 %v407, 0.0
      %v546 = vadd.f32 %v410, 0.0
      %v547 = vadd.f32 %v413, 0.0
      %v548 = vadd.f32 %v416, 0.0
      %v549 = vadd.f32 %v419, 0.0
      %v550 = vadd.f32 %v422, 0.0
      %v551 = vadd.f32 %v425, 0.0
      %v552 = vadd.f32 %v428, 0.0
      %v553 = vadd.f32 %v431, 0.0
      %v554 = vadd.f32 %v434, 0.0
      %v555 = vadd.f32 %v437, 0.0
      %v556 = vadd.f32 %v440, 0.0
      %v557 = vadd.f32 %v443, 0.0
      %v558 = vadd.f32 %v446, 0.0
      %v559 = vadd.f32 %v449, 0.0
      %v560 = vadd.f32 %v452, 0.0
      %v561 = vadd.f32 %v455, 0.0
      %v562 = vadd.f32 %v458, 0.0
      %v563 = vadd.f32 %v461, 0.0
      %v564 = vadd.f32 %v464, 0.0
      %v565 = vadd.f32 %v467, 0.0
      %v566 = vadd.f32 %v470, 0.0
      %v567 = vadd.f32 %v473, 0.0
      %v568 = vadd.f32 %v476, 0.0
      %v569 = vadd.f32 %v479, 0.0
      %v570 = vadd.f32 %v482, 0.0
      %v571 = vadd.f32 %v485, 0.0
      %v572 = vadd.f32 %v488, 0.0
      %v573 = vadd.f32 %v491, 0.0
      %v574 = vadd.f32 %v494, 0.0
      %v575 = vadd.f32 %v497, 0.0
      %v576 = vadd.f32 %v500, 0.0
      %v577 = vadd.f32 %v503, 0.0
      %v578 = vadd.f32 %v506, 0.0
      %v579 = vmul.f32 %v507, 0.020408163
      %v580 = vmul.f32 %v508, 0.020408163
      %v581 = vmul.f32 %v509, 0.020408163
      %v582 = vmul.f32 %v510, 0.020408163
      %v583 = vmul.f32 %v511, 0.020408163
      %v584 = vmul.f32 %v512, 0.020408163
      %v585 = vmul.f32 %v513, 0.020408163
      %v586 = vmul.f32 %v514, 0.020408163
      %v587 = vmul.f32 %v515, 0.020408163
      %v588 = vmul.f32 %v516, 0.020408163
      %v589 = vmul.f32 %v517, 0.020408163
      %v590 = vmul.f32 %v518, 0.020408163
      %v591 = vmul.f32 %v519, 0.020408163
      %v592 = vmul.f32 %v520, 0.020408163
      %v593 = vmul.f32 %v521, 0.020408163
      %v594 = vmul.f32 %v522, 0.020408163
      %v595 = vmul.f32 %v523, 0.020408163
      %v596 = vmul.f32 %v524, 0.020408163
      %v597 = vmul.f32 %v525, 0.020408163
      %v598 = vmul.f32 %v526, 0.020408163
      %v599 = vmul.f32 %v527, 0.020408163
      %v600 = vmul.f32 %v528, 0.020408163
      %v601 = vmul.f32 %v529, 0.020408163
      %v602 = vmul.f32 %v530, 0.020408163
      %v603 = vmul.f32 %v531, 0.020408163
      %v604 = vmul.f32 %v532, 0.020408163
      %v605 = vmul.f32 %v533, 0.020408163
      %v606 = vmul.f32 %v534, 0.020408163
      %v607 = vmul.f32 %v535, 0.020408163
      %v608 = vmul.f32 %v536, 0.020408163
      %v609 = vmul.f32 %v537, 0.020408163
      %v610 = vmul.f32 %v538, 0.020408163
      %v611 = vmul.f32 %v539, 0.020408163
      %v612 = vmul.f32 %v540, 0.020408163
      %v613 = vmul.f32 %v541, 0.020408163
      %v614 = vmul.f32 %v542, 0.020408163
      %v615 = vmul.f32 %v543, 0.020408163
      %v616 = vmul.f32 %v544, 0.020408163
      %v617 = vmul.f32 %v545, 0.020408163
      %v618 = vmul.f32 %v546, 0.020408163
      %v619 = vmul.f32 %v547, 0.020408163
      %v620 = vmul.f32 %v548, 0.020408163
      %v621 = vmul.f32 %v549, 0.020408163
      %v622 = vmul.f32 %v550, 0.020408163
      %v623 = vmul.f32 %v551, 0.020408163
      %v624 = vmul.f32 %v552, 0.020408163
      %v625 = vmul.f32 %v553, 0.020408163
      %v626 = vmul.f32 %v554, 0.020408163
      %v627 = vmul.f32 %v555, 0.020408163
      %v628 = vmul.f32 %v556, 0.020408163
      %v629 = vmul.f32 %v557, 0.020408163
      %v630 = vmul.f32 %v558, 0.020408163
      %v631 = vmul.f32 %v559, 0.020408163
      %v632 = vmul.f32 %v560, 0.020408163
      %v633 = vmul.f32 %v561, 0.020408163
      %v634 = vmul.f32 %v562, 0.020408163
      %v635 = vmul.f32 %v563, 0.020408163
      %v636 = vmul.f32 %v564, 0.020408163
      %v637 = vmul.f32 %v565, 0.020408163
      %v638 = vmul.f32 %v566, 0.020408163
      %v639 = vmul.f32 %v567, 0.020408163
      %v640 = vmul.f32 %v568, 0.020408163
      %v641 = vmul.f32 %v569, 0.020408163
      %v642 = vmul.f32 %v570, 0.020408163
      %v643 = vmul.f32 %v571, 0.020408163
      %v644 = vmul.f32 %v572, 0.020408163
      %v645 = vmul.f32 %v573, 0.020408163
      %v646 = vmul.f32 %v574, 0.020408163
      %v647 = vmul.f32 %v575, 0.020408163
      %v648 = vmul.f32 %v576, 0.020408163
      %v649 = vmul.f32 %v577, 0.020408163
      %v650 = vmul.f32 %v578, 0.020408163
      %v651 = vsub.f32 %v218, %v579
      %v652 = vsub.f32 %v219, %v580
      %v653 = vsub.f32 %v220, %v581
      %v654 = vsub.f32 %v221, %v582
      %v655 = vsub.f32 %v222, %v583
      %v656 = vsub.f32 %v223, %v584
      %v657 = vsub.f32 %v224, %v585
      %v658 = vsub.f32 %v225, %v586
      %v659 = vsub.f32 %v226, %v587
      %v660 = vsub.f32 %v227, %v588
      %v661 = vsub.f32 %v228, %v589
      %v662 = vsub.f32 %v229, %v590
      %v663 = vsub.f32 %v230, %v591
      %v664 = vsub.f32 %v231, %v592
      %v665 = vsub.f32 %v232, %v593
      %v666 = vsub.f32 %v233, %v594
      %v667 = vsub.f32 %v234, %v595
      %v668 = vsub.f32 %v235, %v596
      %v669 = vsub.f32 %v236, %v597
      %v670 = vsub.f32 %v237, %v598
      %v671 = vsub.f32 %v238, %v599
      %v672 = vsub.f32 %v239, %v600
      %v673 = vsub.f32 %v240, %v601
      %v674 = vsub.f32 %v241, %v602
      %v675 = vsub.f32 %v242, %v603
      %v676 = vsub.f32 %v243, %v604
      %v677 = vsub.f32 %v244, %v605
      %v678 = vsub.f32 %v245, %v606
      %v679 = vsub.f32 %v246, %v607
      %v680 = vsub.f32 %v247, %v608
      %v681 = vsub.f32 %v248, %v609
      %v682 = vsub.f32 %v249, %v610
      %v683 = vsub.f32 %v250, %v611
      %v684 = vsub.f32 %v251, %v612
      %v685 = vsub.f32 %v252, %v613
      %v686 = vsub.f32 %v253, %v614
      %v687 = vsub.f32 %v254, %v615
      %v688 = vsub.f32 %v255, %v616
      %v689 = vsub.f32 %v256, %v617
      %v690 = vsub.f32 %v257, %v618
      %v691 = vsub.f32 %v258, %v619
      %v692 = vsub.f32 %v259, %v620
      %v693 = vsub.f32 %v260, %v621
      %v694 = vsub.f32 %v261, %v622
      %v695 = vsub.f32 %v262, %v623
      %v696 = vsub.f32 %v263, %v624
      %v697 = vsub.f32 %v264, %v625
      %v698 = vsub.f32 %v265, %v626
      %v699 = vsub.f32 %v266, %v627
      %v700 = vsub.f32 %v267, %v628
      %v701 = vsub.f32 %v268, %v629
      %v702 = vsub.f32 %v269, %v630
      %v703 = vsub.f32 %v270, %v631
      %v704 = vsub.f32 %v271, %v632
      %v705 = vsub.f32 %v272, %v633
      %v706 = vsub.f32 %v273, %v634
      %v707 = vsub.f32 %v274, %v635
      %v708 = vsub.f32 %v275, %v636
      %v709 = vsub.f32 %v276, %v637
      %v710 = vsub.f32 %v277, %v638
      %v711 = vsub.f32 %v278, %v639
      %v712 = vsub.f32 %v279, %v640
      %v713 = vsub.f32 %v280, %v641
      %v714 = vsub.f32 %v281, %v642
      %v715 = vsub.f32 %v282, %v643
      %v716 = vsub.f32 %v283, %v644
      %v717 = vsub.f32 %v284, %v645
      %v718 = vsub.f32 %v285, %v646
      %v719 = vsub.f32 %v286, %v647
      %v720 = vsub.f32 %v287, %v648
      %v721 = vsub.f32 %v288, %v649
      %v722 = vsub.f32 %v289, %v650
      %v723 = vmul.f32 %v651, %v651
      %v724 = vmul.f32 %v652, %v652
      %v725 = vmul.f32 %v653, %v653
      %v726 = vmul.f32 %v654, %v654
      %v727 = vmul.f32 %v655, %v655
      %v728 = vmul.f32 %v656, %v656
      %v729 = vmul.f32 %v657, %v657
      %v730 = vmul.f32 %v658, %v658
      %v731 = vmul.f32 %v659, %v659
      %v732 = vmul.f32 %v660, %v660
      %v733 = vmul.f32 %v661, %v661
      %v734 = vmul.f32 %v662, %v662
      %v735 = vmul.f32 %v663, %v663
      %v736 = vmul.f32 %v664, %v664
      %v737 = vmul.f32 %v665, %v665
      %v738 = vmul.f32 %v666, %v666
      %v739 = vmul.f32 %v667, %v667
      %v740 = vmul.f32 %v668, %v668
      %v741 = vmul.f32 %v669, %v669
      %v742 = vmul.f32 %v670, %v670
      %v743 = vmul.f32 %v671, %v671
      %v744 = vmul.f32 %v672, %v672
      %v745 = vmul.f32 %v673, %v673
      %v746 = vmul.f32 %v674, %v674
      %v747 = vmul.f32 %v675, %v675
      %v748 = vmul.f32 %v676, %v676
      %v749 = vmul.f32 %v677, %v677
      %v750 = vmul.f32 %v678, %v678
      %v751 = vmul.f32 %v679, %v679
      %v752 = vmul.f32 %v680, %v680
      %v753 = vmul.f32 %v681, %v681
      %v754 = vmul.f32 %v682, %v682
      %v755 = vmul.f32 %v683, %v683
      %v756 = vmul.f32 %v684, %v684
      %v757 = vmul.f32 %v685, %v685
      %v758 = vmul.f32 %v686, %v686
      %v759 = vmul.f32 %v687, %v687
      %v760 = vmul.f32 %v688, %v688
      %v761 = vmul.f32 %v689, %v689
      %v762 = vmul.f32 %v690, %v690
      %v763 = vmul.f32 %v691, %v691
      %v764 = vmul.f32 %v692, %v692
      %v765 = vmul.f32 %v693, %v693
      %v766 = vmul.f32 %v694, %v694
      %v767 = vmul.f32 %v695, %v695
      %v768 = vmul.f32 %v696, %v696
      %v769 = vmul.f32 %v697, %v697
      %v770 = vmul.f32 %v698, %v698
      %v771 = vmul.f32 %v699, %v699
      %v772 = vmul.f32 %v700, %v700
      %v773 = vmul.f32 %v701, %v701
      %v774 = vmul.f32 %v702, %v702
      %v775 = vmul.f32 %v703, %v703
      %v776 = vmul.f32 %v704, %v704
      %v777 = vmul.f32 %v705, %v705
      %v778 = vmul.f32 %v706, %v706
      %v779 = vmul.f32 %v707, %v707
      %v780 = vmul.f32 %v708, %v708
      %v781 = vmul.f32 %v709, %v709
      %v782 = vmul.f32 %v710, %v710
      %v783 = vmul.f32 %v711, %v711
      %v784 = vmul.f32 %v712, %v712
      %v785 = vmul.f32 %v713, %v713
      %v786 = vmul.f32 %v714, %v714
      %v787 = vmul.f32 %v715, %v715
      %v788 = vmul.f32 %v716, %v716
      %v789 = vmul.f32 %v717, %v717
      %v790 = vmul.f32 %v718, %v718
      %v791 = vmul.f32 %v719, %v719
      %v792 = vmul.f32 %v720, %v720
      %v793 = vmul.f32 %v721, %v721
      %v794 = vmul.f32 %v722, %v722
      %v795 = vsel %vm290, %v723, 0.0
      %796 = vadd.xlane.f32.xlu0 %v795
      %v797 = vpop.xlane.xlu0 %796
      %v798 = vsel %vm290, %v724, 0.0
      %799 = vadd.xlane.f32.xlu0 %v798
      %v800 = vpop.xlane.xlu0 %799
      %v801 = vsel %vm290, %v725, 0.0
      %802 = vadd.xlane.f32.xlu0 %v801
      %v803 = vpop.xlane.xlu0 %802
      %v804 = vsel %vm290, %v726, 0.0
      %805 = vadd.xlane.f32.xlu0 %v804
      %v806 = vpop.xlane.xlu0 %805
      %v807 = vsel %vm290, %v727, 0.0
      %808 = vadd.xlane.f32.xlu0 %v807
      %v809 = vpop.xlane.xlu0 %808
      %v810 = vsel %vm290, %v728, 0.0
      %811 = vadd.xlane.f32.xlu0 %v810
      %v812 = vpop.xlane.xlu0 %811
      %v813 = vsel %vm290, %v729, 0.0
      %814 = vadd.xlane.f32.xlu0 %v813
      %v815 = vpop.xlane.xlu0 %814
      %v816 = vsel %vm290, %v730, 0.0
      %817 = vadd.xlane.f32.xlu0 %v816
      %v818 = vpop.xlane.xlu0 %817
      %v819 = vsel %vm290, %v731, 0.0
      %820 = vadd.xlane.f32.xlu0 %v819
      %v821 = vpop.xlane.xlu0 %820
      %v822 = vsel %vm290, %v732, 0.0
      %823 = vadd.xlane.f32.xlu0 %v822
      %v824 = vpop.xlane.xlu0 %823
      %v825 = vsel %vm290, %v733, 0.0
      %826 = vadd.xlane.f32.xlu0 %v825
      %v827 = vpop.xlane.xlu0 %826
      %v828 = vsel %vm290, %v734, 0.0
      %829 = vadd.xlane.f32.xlu0 %v828
      %v830 = vpop.xlane.xlu0 %829
      %v831 = vsel %vm290, %v735, 0.0
      %832 = vadd.xlane.f32.xlu0 %v831
      %v833 = vpop.xlane.xlu0 %832
      %v834 = vsel %vm290, %v736, 0.0
      %835 = vadd.xlane.f32.xlu0 %v834
      %v836 = vpop.xlane.xlu0 %835
      %v837 = vsel %vm290, %v737, 0.0
      %838 = vadd.xlane.f32.xlu0 %v837
      %v839 = vpop.xlane.xlu0 %838
      %v840 = vsel %vm290, %v738, 0.0
      %841 = vadd.xlane.f32.xlu0 %v840
      %v842 = vpop.xlane.xlu0 %841
      %v843 = vsel %vm290, %v739, 0.0
      %844 = vadd.xlane.f32.xlu0 %v843
      %v845 = vpop.xlane.xlu0 %844
      %v846 = vsel %vm290, %v740, 0.0
      %847 = vadd.xlane.f32.xlu0 %v846
      %v848 = vpop.xlane.xlu0 %847
      %v849 = vsel %vm290, %v741, 0.0
      %850 = vadd.xlane.f32.xlu0 %v849
      %v851 = vpop.xlane.xlu0 %850
      %v852 = vsel %vm290, %v742, 0.0
      %853 = vadd.xlane.f32.xlu0 %v852
      %v854 = vpop.xlane.xlu0 %853
      %v855 = vsel %vm290, %v743, 0.0
      %856 = vadd.xlane.f32.xlu0 %v855
      %v857 = vpop.xlane.xlu0 %856
      %v858 = vsel %vm290, %v744, 0.0
      %859 = vadd.xlane.f32.xlu0 %v858
      %v860 = vpop.xlane.xlu0 %859
      %v861 = vsel %vm290, %v745, 0.0
      %862 = vadd.xlane.f32.xlu0 %v861
      %v863 = vpop.xlane.xlu0 %862
      %v864 = vsel %vm290, %v746, 0.0
      %865 = vadd.xlane.f32.xlu0 %v864
      %v866 = vpop.xlane.xlu0 %865
      %v867 = vsel %vm290, %v747, 0.0
      %868 = vadd.xlane.f32.xlu0 %v867
      %v869 = vpop.xlane.xlu0 %868
      %v870 = vsel %vm290, %v748, 0.0
      %871 = vadd.xlane.f32.xlu0 %v870
      %v872 = vpop.xlane.xlu0 %871
      %v873 = vsel %vm290, %v749, 0.0
      %874 = vadd.xlane.f32.xlu0 %v873
      %v875 = vpop.xlane.xlu0 %874
      %v876 = vsel %vm290, %v750, 0.0
      %877 = vadd.xlane.f32.xlu0 %v876
      %v878 = vpop.xlane.xlu0 %877
      %v879 = vsel %vm290, %v751, 0.0
      %880 = vadd.xlane.f32.xlu0 %v879
      %v881 = vpop.xlane.xlu0 %880
      %v882 = vsel %vm290, %v752, 0.0
      %883 = vadd.xlane.f32.xlu0 %v882
      %v884 = vpop.xlane.xlu0 %883
      %v885 = vsel %vm290, %v753, 0.0
      %886 = vadd.xlane.f32.xlu0 %v885
      %v887 = vpop.xlane.xlu0 %886
      %v888 = vsel %vm290, %v754, 0.0
      %889 = vadd.xlane.f32.xlu0 %v888
      %v890 = vpop.xlane.xlu0 %889
      %v891 = vsel %vm290, %v755, 0.0
      %892 = vadd.xlane.f32.xlu0 %v891
      %v893 = vpop.xlane.xlu0 %892
      %v894 = vsel %vm290, %v756, 0.0
      %895 = vadd.xlane.f32.xlu0 %v894
      %v896 = vpop.xlane.xlu0 %895
      %v897 = vsel %vm290, %v757, 0.0
      %898 = vadd.xlane.f32.xlu0 %v897
      %v899 = vpop.xlane.xlu0 %898
      %v900 = vsel %vm290, %v758, 0.0
      %901 = vadd.xlane.f32.xlu0 %v900
      %v902 = vpop.xlane.xlu0 %901
      %v903 = vsel %vm290, %v759, 0.0
      %904 = vadd.xlane.f32.xlu0 %v903
      %v905 = vpop.xlane.xlu0 %904
      %v906 = vsel %vm290, %v760, 0.0
      %907 = vadd.xlane.f32.xlu0 %v906
      %v908 = vpop.xlane.xlu0 %907
      %v909 = vsel %vm290, %v761, 0.0
      %910 = vadd.xlane.f32.xlu0 %v909
      %v911 = vpop.xlane.xlu0 %910
      %v912 = vsel %vm290, %v762, 0.0
      %913 = vadd.xlane.f32.xlu0 %v912
      %v914 = vpop.xlane.xlu0 %913
      %v915 = vsel %vm290, %v763, 0.0
      %916 = vadd.xlane.f32.xlu0 %v915
      %v917 = vpop.xlane.xlu0 %916
      %v918 = vsel %vm290, %v764, 0.0
      %919 = vadd.xlane.f32.xlu0 %v918
      %v920 = vpop.xlane.xlu0 %919
      %v921 = vsel %vm290, %v765, 0.0
      %922 = vadd.xlane.f32.xlu0 %v921
      %v923 = vpop.xlane.xlu0 %922
      %v924 = vsel %vm290, %v766, 0.0
      %925 = vadd.xlane.f32.xlu0 %v924
      %v926 = vpop.xlane.xlu0 %925
      %v927 = vsel %vm290, %v767, 0.0
      %928 = vadd.xlane.f32.xlu0 %v927
      %v929 = vpop.xlane.xlu0 %928
      %v930 = vsel %vm290, %v768, 0.0
      %931 = vadd.xlane.f32.xlu0 %v930
      %v932 = vpop.xlane.xlu0 %931
      %v933 = vsel %vm290, %v769, 0.0
      %934 = vadd.xlane.f32.xlu0 %v933
      %v935 = vpop.xlane.xlu0 %934
      %v936 = vsel %vm290, %v770, 0.0
      %937 = vadd.xlane.f32.xlu0 %v936
      %v938 = vpop.xlane.xlu0 %937
      %v939 = vsel %vm290, %v771, 0.0
      %940 = vadd.xlane.f32.xlu0 %v939
      %v941 = vpop.xlane.xlu0 %940
      %v942 = vsel %vm290, %v772, 0.0
      %943 = vadd.xlane.f32.xlu0 %v942
      %v944 = vpop.xlane.xlu0 %943
      %v945 = vsel %vm290, %v773, 0.0
      %946 = vadd.xlane.f32.xlu0 %v945
      %v947 = vpop.xlane.xlu0 %946
      %v948 = vsel %vm290, %v774, 0.0
      %949 = vadd.xlane.f32.xlu0 %v948
      %v950 = vpop.xlane.xlu0 %949
      %v951 = vsel %vm290, %v775, 0.0
      %952 = vadd.xlane.f32.xlu0 %v951
      %v953 = vpop.xlane.xlu0 %952
      %v954 = vsel %vm290, %v776, 0.0
      %955 = vadd.xlane.f32.xlu0 %v954
      %v956 = vpop.xlane.xlu0 %955
      %v957 = vsel %vm290, %v777, 0.0
      %958 = vadd.xlane.f32.xlu0 %v957
      %v959 = vpop.xlane.xlu0 %958
      %v960 = vsel %vm290, %v778, 0.0
      %961 = vadd.xlane.f32.xlu0 %v960
      %v962 = vpop.xlane.xlu0 %961
      %v963 = vsel %vm290, %v779, 0.0
      %964 = vadd.xlane.f32.xlu0 %v963
      %v965 = vpop.xlane.xlu0 %964
      %v966 = vsel %vm290, %v780, 0.0
      %967 = vadd.xlane.f32.xlu0 %v966
      %v968 = vpop.xlane.xlu0 %967
      %v969 = vsel %vm290, %v781, 0.0
      %970 = vadd.xlane.f32.xlu0 %v969
      %v971 = vpop.xlane.xlu0 %970
      %v972 = vsel %vm290, %v782, 0.0
      %973 = vadd.xlane.f32.xlu0 %v972
      %v974 = vpop.xlane.xlu0 %973
      %v975 = vsel %vm290, %v783, 0.0
      %976 = vadd.xlane.f32.xlu0 %v975
      %v977 = vpop.xlane.xlu0 %976
      %v978 = vsel %vm290, %v784, 0.0
      %979 = vadd.xlane.f32.xlu0 %v978
      %v980 = vpop.xlane.xlu0 %979
      %v981 = vsel %vm290, %v785, 0.0
      %982 = vadd.xlane.f32.xlu0 %v981
      %v983 = vpop.xlane.xlu0 %982
      %v984 = vsel %vm290, %v786, 0.0
      %985 = vadd.xlane.f32.xlu0 %v984
      %v986 = vpop.xlane.xlu0 %985
      %v987 = vsel %vm290, %v787, 0.0
      %988 = vadd.xlane.f32.xlu0 %v987
      %v989 = vpop.xlane.xlu0 %988
      %v990 = vsel %vm290, %v788, 0.0
      %991 = vadd.xlane.f32.xlu0 %v990
      %v992 = vpop.xlane.xlu0 %991
      %v993 = vsel %vm290, %v789, 0.0
      %994 = vadd.xlane.f32.xlu0 %v993
      %v995 = vpop.xlane.xlu0 %994
      %v996 = vsel %vm290, %v790, 0.0
      %997 = vadd.xlane.f32.xlu0 %v996
      %v998 = vpop.xlane.xlu0 %997
      %v999 = vsel %vm290, %v791, 0.0
      %1000 = vadd.xlane.f32.xlu0 %v999
      %v1001 = vpop.xlane.xlu0 %1000
      %v1002 = vsel %vm290, %v792, 0.0
      %1003 = vadd.xlane.f32.xlu0 %v1002
      %v1004 = vpop.xlane.xlu0 %1003
      %v1005 = vsel %vm290, %v793, 0.0
      %1006 = vadd.xlane.f32.xlu0 %v1005
      %v1007 = vpop.xlane.xlu0 %1006
      %v1008 = vsel %vm290, %v794, 0.0
      %1009 = vadd.xlane.f32.xlu0 %v1008
      %v1010 = vpop.xlane.xlu0 %1009
      %v1011 = vadd.f32 %v797, 0.0
      %v1012 = vadd.f32 %v800, 0.0
      %v1013 = vadd.f32 %v803, 0.0
      %v1014 = vadd.f32 %v806, 0.0
      %v1015 = vadd.f32 %v809, 0.0
      %v1016 = vadd.f32 %v812, 0.0
      %v1017 = vadd.f32 %v815, 0.0
      %v1018 = vadd.f32 %v818, 0.0
      %v1019 = vadd.f32 %v821, 0.0
      %v1020 = vadd.f32 %v824, 0.0
      %v1021 = vadd.f32 %v827, 0.0
      %v1022 = vadd.f32 %v830, 0.0
      %v1023 = vadd.f32 %v833, 0.0
      %v1024 = vadd.f32 %v836, 0.0
      %v1025 = vadd.f32 %v839, 0.0
      %v1026 = vadd.f32 %v842, 0.0
      %v1027 = vadd.f32 %v845, 0.0
      %v1028 = vadd.f32 %v848, 0.0
      %v1029 = vadd.f32 %v851, 0.0
      %v1030 = vadd.f32 %v854, 0.0
      %v1031 = vadd.f32 %v857, 0.0
      %v1032 = vadd.f32 %v860, 0.0
      %v1033 = vadd.f32 %v863, 0.0
      %v1034 = vadd.f32 %v866, 0.0
      %v1035 = vadd.f32 %v869, 0.0
      %v1036 = vadd.f32 %v872, 0.0
      %v1037 = vadd.f32 %v875, 0.0
      %v1038 = vadd.f32 %v878, 0.0
      %v1039 = vadd.f32 %v881, 0.0
      %v1040 = vadd.f32 %v884, 0.0
      %v1041 = vadd.f32 %v887, 0.0
      %v1042 = vadd.f32 %v890, 0.0
      %v1043 = vadd.f32 %v893, 0.0
      %v1044 = vadd.f32 %v896, 0.0
      %v1045 = vadd.f32 %v899, 0.0
      %v1046 = vadd.f32 %v902, 0.0
      %v1047 = vadd.f32 %v905, 0.0
      %v1048 = vadd.f32 %v908, 0.0
      %v1049 = vadd.f32 %v911, 0.0
      %v1050 = vadd.f32 %v914, 0.0
      %v1051 = vadd.f32 %v917, 0.0
      %v1052 = vadd.f32 %v920, 0.0
      %v1053 = vadd.f32 %v923, 0.0
      %v1054 = vadd.f32 %v926, 0.0
      %v1055 = vadd.f32 %v929, 0.0
      %v1056 = vadd.f32 %v932, 0.0
      %v1057 = vadd.f32 %v935, 0.0
      %v1058 = vadd.f32 %v938, 0.0
      %v1059 = vadd.f32 %v941, 0.0
      %v1060 = vadd.f32 %v944, 0.0
      %v1061 = vadd.f32 %v947, 0.0
      %v1062 = vadd.f32 %v950, 0.0
      %v1063 = vadd.f32 %v953, 0.0
      %v1064 = vadd.f32 %v956, 0.0
      %v1065 = vadd.f32 %v959, 0.0
      %v1066 = vadd.f32 %v962, 0.0
      %v1067 = vadd.f32 %v965, 0.0
      %v1068 = vadd.f32 %v968, 0.0
      %v1069 = vadd.f32 %v971, 0.0
      %v1070 = vadd.f32 %v974, 0.0
      %v1071 = vadd.f32 %v977, 0.0
      %v1072 = vadd.f32 %v980, 0.0
      %v1073 = vadd.f32 %v983, 0.0
      %v1074 = vadd.f32 %v986, 0.0
      %v1075 = vadd.f32 %v989, 0.0
      %v1076 = vadd.f32 %v992, 0.0
      %v1077 = vadd.f32 %v995, 0.0
      %v1078 = vadd.f32 %v998, 0.0
      %v1079 = vadd.f32 %v1001, 0.0
      %v1080 = vadd.f32 %v1004, 0.0
      %v1081 = vadd.f32 %v1007, 0.0
      %v1082 = vadd.f32 %v1010, 0.0
      %v1083 = vmul.f32 %v1011, 0.020408163
      %v1084 = vmul.f32 %v1012, 0.020408163
      %v1085 = vmul.f32 %v1013, 0.020408163
      %v1086 = vmul.f32 %v1014, 0.020408163
      %v1087 = vmul.f32 %v1015, 0.020408163
      %v1088 = vmul.f32 %v1016, 0.020408163
      %v1089 = vmul.f32 %v1017, 0.020408163
      %v1090 = vmul.f32 %v1018, 0.020408163
      %v1091 = vmul.f32 %v1019, 0.020408163
      %v1092 = vmul.f32 %v1020, 0.020408163
      %v1093 = vmul.f32 %v1021, 0.020408163
      %v1094 = vmul.f32 %v1022, 0.020408163
      %v1095 = vmul.f32 %v1023, 0.020408163
      %v1096 = vmul.f32 %v1024, 0.020408163
      %v1097 = vmul.f32 %v1025, 0.020408163
      %v1098 = vmul.f32 %v1026, 0.020408163
      %v1099 = vmul.f32 %v1027, 0.020408163
      %v1100 = vmul.f32 %v1028, 0.020408163
      %v1101 = vmul.f32 %v1029, 0.020408163
      %v1102 = vmul.f32 %v1030, 0.020408163
      %v1103 = vmul.f32 %v1031, 0.020408163
      %v1104 = vmul.f32 %v1032, 0.020408163
      %v1105 = vmul.f32 %v1033, 0.020408163
      %v1106 = vmul.f32 %v1034, 0.020408163
      %v1107 = vmul.f32 %v1035, 0.020408163
      %v1108 = vmul.f32 %v1036, 0.020408163
      %v1109 = vmul.f32 %v1037, 0.020408163
      %v1110 = vmul.f32 %v1038, 0.020408163
      %v1111 = vmul.f32 %v1039, 0.020408163
      %v1112 = vmul.f32 %v1040, 0.020408163
      %v1113 = vmul.f32 %v1041, 0.020408163
      %v1114 = vmul.f32 %v1042, 0.020408163
      %v1115 = vmul.f32 %v1043, 0.020408163
      %v1116 = vmul.f32 %v1044, 0.020408163
      %v1117 = vmul.f32 %v1045, 0.020408163
      %v1118 = vmul.f32 %v1046, 0.020408163
      %v1119 = vmul.f32 %v1047, 0.020408163
      %v1120 = vmul.f32 %v1048, 0.020408163
      %v1121 = vmul.f32 %v1049, 0.020408163
      %v1122 = vmul.f32 %v1050, 0.020408163
      %v1123 = vmul.f32 %v1051, 0.020408163
      %v1124 = vmul.f32 %v1052, 0.020408163
      %v1125 = vmul.f32 %v1053, 0.020408163
      %v1126 = vmul.f32 %v1054, 0.020408163
      %v1127 = vmul.f32 %v1055, 0.020408163
      %v1128 = vmul.f32 %v1056, 0.020408163
      %v1129 = vmul.f32 %v1057, 0.020408163
      %v1130 = vmul.f32 %v1058, 0.020408163
      %v1131 = vmul.f32 %v1059, 0.020408163
      %v1132 = vmul.f32 %v1060, 0.020408163
      %v1133 = vmul.f32 %v1061, 0.020408163
      %v1134 = vmul.f32 %v1062, 0.020408163
      %v1135 = vmul.f32 %v1063, 0.020408163
      %v1136 = vmul.f32 %v1064, 0.020408163
      %v1137 = vmul.f32 %v1065, 0.020408163
      %v1138 = vmul.f32 %v1066, 0.020408163
      %v1139 = vmul.f32 %v1067, 0.020408163
      %v1140 = vmul.f32 %v1068, 0.020408163
      %v1141 = vmul.f32 %v1069, 0.020408163
      %v1142 = vmul.f32 %v1070, 0.020408163
      %v1143 = vmul.f32 %v1071, 0.020408163
      %v1144 = vmul.f32 %v1072, 0.020408163
      %v1145 = vmul.f32 %v1073, 0.020408163
      %v1146 = vmul.f32 %v1074, 0.020408163
      %v1147 = vmul.f32 %v1075, 0.020408163
      %v1148 = vmul.f32 %v1076, 0.020408163
      %v1149 = vmul.f32 %v1077, 0.020408163
      %v1150 = vmul.f32 %v1078, 0.020408163
      %v1151 = vmul.f32 %v1079, 0.020408163
      %v1152 = vmul.f32 %v1080, 0.020408163
      %v1153 = vmul.f32 %v1081, 0.020408163
      %v1154 = vmul.f32 %v1082, 0.020408163
      %v1155 = vadd.f32 %v1083, 0.001
      %v1156 = vadd.f32 %v1084, 0.001
      %v1157 = vadd.f32 %v1085, 0.001
      %v1158 = vadd.f32 %v1086, 0.001
      %v1159 = vadd.f32 %v1087, 0.001
      %v1160 = vadd.f32 %v1088, 0.001
      %v1161 = vadd.f32 %v1089, 0.001
      %v1162 = vadd.f32 %v1090, 0.001
      %v1163 = vadd.f32 %v1091, 0.001
      %v1164 = vadd.f32 %v1092, 0.001
      %v1165 = vadd.f32 %v1093, 0.001
      %v1166 = vadd.f32 %v1094, 0.001
      %v1167 = vadd.f32 %v1095, 0.001
      %v1168 = vadd.f32 %v1096, 0.001
      %v1169 = vadd.f32 %v1097, 0.001
      %v1170 = vadd.f32 %v1098, 0.001
      %v1171 = vadd.f32 %v1099, 0.001
      %v1172 = vadd.f32 %v1100, 0.001
      %v1173 = vadd.f32 %v1101, 0.001
      %v1174 = vadd.f32 %v1102, 0.001
      %v1175 = vadd.f32 %v1103, 0.001
      %v1176 = vadd.f32 %v1104, 0.001
      %v1177 = vadd.f32 %v1105, 0.001
      %v1178 = vadd.f32 %v1106, 0.001
      %v1179 = vadd.f32 %v1107, 0.001
      %v1180 = vadd.f32 %v1108, 0.001
      %v1181 = vadd.f32 %v1109, 0.001
      %v1182 = vadd.f32 %v1110, 0.001
      %v1183 = vadd.f32 %v1111, 0.001
      %v1184 = vadd.f32 %v1112, 0.001
      %v1185 = vadd.f32 %v1113, 0.001
      %v1186 = vadd.f32 %v1114, 0.001
      %v1187 = vadd.f32 %v1115, 0.001
      %v1188 = vadd.f32 %v1116, 0.001
      %v1189 = vadd.f32 %v1117, 0.001
      %v1190 = vadd.f32 %v1118, 0.001
      %v1191 = vadd.f32 %v1119, 0.001
      %v1192 = vadd.f32 %v1120, 0.001
      %v1193 = vadd.f32 %v1121, 0.001
      %v1194 = vadd.f32 %v1122, 0.001
      %v1195 = vadd.f32 %v1123, 0.001
      %v1196 = vadd.f32 %v1124, 0.001
      %v1197 = vadd.f32 %v1125, 0.001
      %v1198 = vadd.f32 %v1126, 0.001
      %v1199 = vadd.f32 %v1127, 0.001
      %v1200 = vadd.f32 %v1128, 0.001
      %v1201 = vadd.f32 %v1129, 0.001
      %v1202 = vadd.f32 %v1130, 0.001
      %v1203 = vadd.f32 %v1131, 0.001
      %v1204 = vadd.f32 %v1132, 0.001
      %v1205 = vadd.f32 %v1133, 0.001
      %v1206 = vadd.f32 %v1134, 0.001
      %v1207 = vadd.f32 %v1135, 0.001
      %v1208 = vadd.f32 %v1136, 0.001
      %v1209 = vadd.f32 %v1137, 0.001
      %v1210 = vadd.f32 %v1138, 0.001
      %v1211 = vadd.f32 %v1139, 0.001
      %v1212 = vadd.f32 %v1140, 0.001
      %v1213 = vadd.f32 %v1141, 0.001
      %v1214 = vadd.f32 %v1142, 0.001
      %v1215 = vadd.f32 %v1143, 0.001
      %v1216 = vadd.f32 %v1144, 0.001
      %v1217 = vadd.f32 %v1145, 0.001
      %v1218 = vadd.f32 %v1146, 0.001
      %v1219 = vadd.f32 %v1147, 0.001
      %v1220 = vadd.f32 %v1148, 0.001
      %v1221 = vadd.f32 %v1149, 0.001
      %v1222 = vadd.f32 %v1150, 0.001
      %v1223 = vadd.f32 %v1151, 0.001
      %v1224 = vadd.f32 %v1152, 0.001
      %v1225 = vadd.f32 %v1153, 0.001
      %v1226 = vadd.f32 %v1154, 0.001
      %v1227 = vrsqrt.pop %v1155
      %v1228 = vrsqrt.pop %v1156
      %v1229 = vrsqrt.pop %v1157
      %v1230 = vrsqrt.pop %v1158
      %v1231 = vrsqrt.pop %v1159
      %v1232 = vrsqrt.pop %v1160
      %v1233 = vrsqrt.pop %v1161
      %v1234 = vrsqrt.pop %v1162
      %v1235 = vrsqrt.pop %v1163
      %v1236 = vrsqrt.pop %v1164
      %v1237 = vrsqrt.pop %v1165
      %v1238 = vrsqrt.pop %v1166
      %v1239 = vrsqrt.pop %v1167
      %v1240 = vrsqrt.pop %v1168
      %v1241 = vrsqrt.pop %v1169
      %v1242 = vrsqrt.pop %v1170
      %v1243 = vrsqrt.pop %v1171
      %v1244 = vrsqrt.pop %v1172
      %v1245 = vrsqrt.pop %v1173
      %v1246 = vrsqrt.pop %v1174
      %v1247 = vrsqrt.pop %v1175
      %v1248 = vrsqrt.pop %v1176
      %v1249 = vrsqrt.pop %v1177
      %v1250 = vrsqrt.pop %v1178
      %v1251 = vrsqrt.pop %v1179
      %v1252 = vrsqrt.pop %v1180
      %v1253 = vrsqrt.pop %v1181
      %v1254 = vrsqrt.pop %v1182
      %v1255 = vrsqrt.pop %v1183
      %v1256 = vrsqrt.pop %v1184
      %v1257 = vrsqrt.pop %v1185
      %v1258 = vrsqrt.pop %v1186
      %v1259 = vrsqrt.pop %v1187
      %v1260 = vrsqrt.pop %v1188
      %v1261 = vrsqrt.pop %v1189
      %v1262 = vrsqrt.pop %v1190
      %v1263 = vrsqrt.pop %v1191
      %v1264 = vrsqrt.pop %v1192
      %v1265 = vrsqrt.pop %v1193
      %v1266 = vrsqrt.pop %v1194
      %v1267 = vrsqrt.pop %v1195
      %v1268 = vrsqrt.pop %v1196
      %v1269 = vrsqrt.pop %v1197
      %v1270 = vrsqrt.pop %v1198
      %v1271 = vrsqrt.pop %v1199
      %v1272 = vrsqrt.pop %v1200
      %v1273 = vrsqrt.pop %v1201
      %v1274 = vrsqrt.pop %v1202
      %v1275 = vrsqrt.pop %v1203
      %v1276 = vrsqrt.pop %v1204
      %v1277 = vrsqrt.pop %v1205
      %v1278 = vrsqrt.pop %v1206
      %v1279 = vrsqrt.pop %v1207
      %v1280 = vrsqrt.pop %v1208
      %v1281 = vrsqrt.pop %v1209
      %v1282 = vrsqrt.pop %v1210
      %v1283 = vrsqrt.pop %v1211
      %v1284 = vrsqrt.pop %v1212
      %v1285 = vrsqrt.pop %v1213
      %v1286 = vrsqrt.pop %v1214
      %v1287 = vrsqrt.pop %v1215
      %v1288 = vrsqrt.pop %v1216
      %v1289 = vrsqrt.pop %v1217
      %v1290 = vrsqrt.pop %v1218
      %v1291 = vrsqrt.pop %v1219
      %v1292 = vrsqrt.pop %v1220
      %v1293 = vrsqrt.pop %v1221
      %v1294 = vrsqrt.pop %v1222
      %v1295 = vrsqrt.pop %v1223
      %v1296 = vrsqrt.pop %v1224
      %v1297 = vrsqrt.pop %v1225
      %v1298 = vrsqrt.pop %v1226
      %v1299 = vld [vmem:[%s204] sm:$0xff]
      %v1300 = vld [vmem:[%s204 + $0x8] sm:$0xff]
      %v1301 = vld [vmem:[%s204 + $0x10] sm:$0xff]
      %v1302 = vld [vmem:[%s204 + $0x18] sm:$0xff]
      %v1303 = vld [vmem:[%s204 + $0x20] sm:$0xff]
      %v1304 = vld [vmem:[%s204 + $0x28] sm:$0xff]
      %v1305 = vld [vmem:[%s204 + $0x30] sm:$0xff]
      %v1306 = vld [vmem:[%s204 + $0x38] sm:$0xff]
      %v1307 = vld [vmem:[%s204 + $0x40] sm:$0xff]
      %v1308 = vld [vmem:[%s204 + $0x48] sm:$0xff]
      %v1309 = vld [vmem:[%s204 + $0x50] sm:$0xff]
      %v1310 = vld [vmem:[%s204 + $0x58] sm:$0xff]
      %v1311 = vld [vmem:[%s204 + $0x60] sm:$0xff]
      %v1312 = vld [vmem:[%s204 + $0x68] sm:$0xff]
      %v1313 = vld [vmem:[%s204 + $0x70] sm:$0xff]
      %v1314 = vld [vmem:[%s204 + $0x78] sm:$0xff]
      %v1315 = vld [vmem:[%s204 + $0x80] sm:$0xff]
      %v1316 = vld [vmem:[%s204 + $0x88] sm:$0xff]
      %v1317 = vld [vmem:[%s204 + $0x90] sm:$0xff]
      %v1318 = vld [vmem:[%s204 + $0x98] sm:$0xff]
      %v1319 = vld [vmem:[%s204 + $0xa0] sm:$0xff]
      %v1320 = vld [vmem:[%s204 + $0xa8] sm:$0xff]
      %v1321 = vld [vmem:[%s204 + $0xb0] sm:$0xff]
      %v1322 = vld [vmem:[%s204 + $0xb8] sm:$0xff]
      %v1323 = vld [vmem:[%s204 + $0xc0] sm:$0xff]
      %v1324 = vld [vmem:[%s204 + $0xc8] sm:$0xff]
      %v1325 = vld [vmem:[%s204 + $0xd0] sm:$0xff]
      %v1326 = vld [vmem:[%s204 + $0xd8] sm:$0xff]
      %v1327 = vld [vmem:[%s204 + $0xe0] sm:$0xff]
      %v1328 = vld [vmem:[%s204 + $0xe8] sm:$0xff]
      %v1329 = vld [vmem:[%s204 + $0xf0] sm:$0xff]
      %v1330 = vld [vmem:[%s204 + $0xf8] sm:$0xff]
      %v1331 = vld [vmem:[%s204 + $0x100] sm:$0xff]
      %v1332 = vld [vmem:[%s204 + $0x108] sm:$0xff]
      %v1333 = vld [vmem:[%s204 + $0x110] sm:$0xff]
      %v1334 = vld [vmem:[%s204 + $0x118] sm:$0xff]
      %v1335 = vld [vmem:[%s204 + $0x120] sm:$0xff]
      %v1336 = vld [vmem:[%s204 + $0x128] sm:$0xff]
      %v1337 = vld [vmem:[%s204 + $0x130] sm:$0xff]
      %v1338 = vld [vmem:[%s204 + $0x138] sm:$0xff]
      %v1339 = vld [vmem:[%s204 + $0x140] sm:$0xff]
      %v1340 = vld [vmem:[%s204 + $0x148] sm:$0xff]
      %v1341 = vld [vmem:[%s204 + $0x150] sm:$0xff]
      %v1342 = vld [vmem:[%s204 + $0x158] sm:$0xff]
      %v1343 = vld [vmem:[%s204 + $0x160] sm:$0xff]
      %v1344 = vld [vmem:[%s204 + $0x168] sm:$0xff]
      %v1345 = vld [vmem:[%s204 + $0x170] sm:$0xff]
      %v1346 = vld [vmem:[%s204 + $0x178] sm:$0xff]
      %v1347 = vld [vmem:[%s204 + $0x180] sm:$0xff]
      %v1348 = vld [vmem:[%s204 + $0x188] sm:$0xff]
      %v1349 = vld [vmem:[%s204 + $0x190] sm:$0xff]
      %v1350 = vld [vmem:[%s204 + $0x198] sm:$0xff]
      %v1351 = vld [vmem:[%s204 + $0x1a0] sm:$0xff]
      %v1352 = vld [vmem:[%s204 + $0x1a8] sm:$0xff]
      %v1353 = vld [vmem:[%s204 + $0x1b0] sm:$0xff]
      %v1354 = vld [vmem:[%s204 + $0x1b8] sm:$0xff]
      %v1355 = vld [vmem:[%s204 + $0x1c0] sm:$0xff]
      %v1356 = vld [vmem:[%s204 + $0x1c8] sm:$0xff]
      %v1357 = vld [vmem:[%s204 + $0x1d0] sm:$0xff]
      %v1358 = vld [vmem:[%s204 + $0x1d8] sm:$0xff]
      %v1359 = vld [vmem:[%s204 + $0x1e0] sm:$0xff]
      %v1360 = vld [vmem:[%s204 + $0x1e8] sm:$0xff]
      %v1361 = vld [vmem:[%s204 + $0x1f0] sm:$0xff]
      %v1362 = vld [vmem:[%s204 + $0x1f8] sm:$0xff]
      %v1363 = vld [vmem:[%s204 + $0x200] sm:$0xff]
      %v1364 = vld [vmem:[%s204 + $0x208] sm:$0xff]
      %v1365 = vld [vmem:[%s204 + $0x210] sm:$0xff]
      %v1366 = vld [vmem:[%s204 + $0x218] sm:$0xff]
      %v1367 = vld [vmem:[%s204 + $0x220] sm:$0xff]
      %v1368 = vld [vmem:[%s204 + $0x228] sm:$0xff]
      %v1369 = vld [vmem:[%s204 + $0x230] sm:$0xff]
      %v1370 = vld [vmem:[%s204 + $0x238] sm:$0xff]
      %v1371 = vmul.f32 %v1227, %v1299
      %v1372 = vmul.f32 %v1228, %v1300
      %v1373 = vmul.f32 %v1229, %v1301
      %v1374 = vmul.f32 %v1230, %v1302
      %v1375 = vmul.f32 %v1231, %v1303
      %v1376 = vmul.f32 %v1232, %v1304
      %v1377 = vmul.f32 %v1233, %v1305
      %v1378 = vmul.f32 %v1234, %v1306
      %v1379 = vmul.f32 %v1235, %v1307
      %v1380 = vmul.f32 %v1236, %v1308
      %v1381 = vmul.f32 %v1237, %v1309
      %v1382 = vmul.f32 %v1238, %v1310
      %v1383 = vmul.f32 %v1239, %v1311
      %v1384 = vmul.f32 %v1240, %v1312
      %v1385 = vmul.f32 %v1241, %v1313
      %v1386 = vmul.f32 %v1242, %v1314
      %v1387 = vmul.f32 %v1243, %v1315
      %v1388 = vmul.f32 %v1244, %v1316
      %v1389 = vmul.f32 %v1245, %v1317
      %v1390 = vmul.f32 %v1246, %v1318
      %v1391 = vmul.f32 %v1247, %v1319
      %v1392 = vmul.f32 %v1248, %v1320
      %v1393 = vmul.f32 %v1249, %v1321
      %v1394 = vmul.f32 %v1250, %v1322
      %v1395 = vmul.f32 %v1251, %v1323
      %v1396 = vmul.f32 %v1252, %v1324
      %v1397 = vmul.f32 %v1253, %v1325
      %v1398 = vmul.f32 %v1254, %v1326
      %v1399 = vmul.f32 %v1255, %v1327
      %v1400 = vmul.f32 %v1256, %v1328
      %v1401 = vmul.f32 %v1257, %v1329
      %v1402 = vmul.f32 %v1258, %v1330
      %v1403 = vmul.f32 %v1259, %v1331
      %v1404 = vmul.f32 %v1260, %v1332
      %v1405 = vmul.f32 %v1261, %v1333
      %v1406 = vmul.f32 %v1262, %v1334
      %v1407 = vmul.f32 %v1263, %v1335
      %v1408 = vmul.f32 %v1264, %v1336
      %v1409 = vmul.f32 %v1265, %v1337
      %v1410 = vmul.f32 %v1266, %v1338
      %v1411 = vmul.f32 %v1267, %v1339
      %v1412 = vmul.f32 %v1268, %v1340
      %v1413 = vmul.f32 %v1269, %v1341
      %v1414 = vmul.f32 %v1270, %v1342
      %v1415 = vmul.f32 %v1271, %v1343
      %v1416 = vmul.f32 %v1272, %v1344
      %v1417 = vmul.f32 %v1273, %v1345
      %v1418 = vmul.f32 %v1274, %v1346
      %v1419 = vmul.f32 %v1275, %v1347
      %v1420 = vmul.f32 %v1276, %v1348
      %v1421 = vmul.f32 %v1277, %v1349
      %v1422 = vmul.f32 %v1278, %v1350
      %v1423 = vmul.f32 %v1279, %v1351
      %v1424 = vmul.f32 %v1280, %v1352
      %v1425 = vmul.f32 %v1281, %v1353
      %v1426 = vmul.f32 %v1282, %v1354
      %v1427 = vmul.f32 %v1283, %v1355
      %v1428 = vmul.f32 %v1284, %v1356
      %v1429 = vmul.f32 %v1285, %v1357
      %v1430 = vmul.f32 %v1286, %v1358
      %v1431 = vmul.f32 %v1287, %v1359
      %v1432 = vmul.f32 %v1288, %v1360
      %v1433 = vmul.f32 %v1289, %v1361
      %v1434 = vmul.f32 %v1290, %v1362
      %v1435 = vmul.f32 %v1291, %v1363
      %v1436 = vmul.f32 %v1292, %v1364
      %v1437 = vmul.f32 %v1293, %v1365
      %v1438 = vmul.f32 %v1294, %v1366
      %v1439 = vmul.f32 %v1295, %v1367
      %v1440 = vmul.f32 %v1296, %v1368
      %v1441 = vmul.f32 %v1297, %v1369
      %v1442 = vmul.f32 %v1298, %v1370
      %v1443 = vld [vmem:[%s210] sm:$0xff]
      %v1444 = vld [vmem:[%s210 + $0x8] sm:$0xff]
      %v1445 = vld [vmem:[%s210 + $0x10] sm:$0xff]
      %v1446 = vld [vmem:[%s210 + $0x18] sm:$0xff]
      %v1447 = vld [vmem:[%s210 + $0x20] sm:$0xff]
      %v1448 = vld [vmem:[%s210 + $0x28] sm:$0xff]
      %v1449 = vld [vmem:[%s210 + $0x30] sm:$0xff]
      %v1450 = vld [vmem:[%s210 + $0x38] sm:$0xff]
      %v1451 = vld [vmem:[%s210 + $0x40] sm:$0xff]
      %v1452 = vld [vmem:[%s210 + $0x48] sm:$0xff]
      %v1453 = vld [vmem:[%s210 + $0x50] sm:$0xff]
      %v1454 = vld [vmem:[%s210 + $0x58] sm:$0xff]
      %v1455 = vld [vmem:[%s210 + $0x60] sm:$0xff]
      %v1456 = vld [vmem:[%s210 + $0x68] sm:$0xff]
      %v1457 = vld [vmem:[%s210 + $0x70] sm:$0xff]
      %v1458 = vld [vmem:[%s210 + $0x78] sm:$0xff]
      %v1459 = vld [vmem:[%s210 + $0x80] sm:$0xff]
      %v1460 = vld [vmem:[%s210 + $0x88] sm:$0xff]
      %v1461 = vld [vmem:[%s210 + $0x90] sm:$0xff]
      %v1462 = vld [vmem:[%s210 + $0x98] sm:$0xff]
      %v1463 = vld [vmem:[%s210 + $0xa0] sm:$0xff]
      %v1464 = vld [vmem:[%s210 + $0xa8] sm:$0xff]
      %v1465 = vld [vmem:[%s210 + $0xb0] sm:$0xff]
      %v1466 = vld [vmem:[%s210 + $0xb8] sm:$0xff]
      %v1467 = vld [vmem:[%s210 + $0xc0] sm:$0xff]
      %v1468 = vld [vmem:[%s210 + $0xc8] sm:$0xff]
      %v1469 = vld [vmem:[%s210 + $0xd0] sm:$0xff]
      %v1470 = vld [vmem:[%s210 + $0xd8] sm:$0xff]
      %v1471 = vld [vmem:[%s210 + $0xe0] sm:$0xff]
      %v1472 = vld [vmem:[%s210 + $0xe8] sm:$0xff]
      %v1473 = vld [vmem:[%s210 + $0xf0] sm:$0xff]
      %v1474 = vld [vmem:[%s210 + $0xf8] sm:$0xff]
      %v1475 = vld [vmem:[%s210 + $0x100] sm:$0xff]
      %v1476 = vld [vmem:[%s210 + $0x108] sm:$0xff]
      %v1477 = vld [vmem:[%s210 + $0x110] sm:$0xff]
      %v1478 = vld [vmem:[%s210 + $0x118] sm:$0xff]
      %v1479 = vld [vmem:[%s210 + $0x120] sm:$0xff]
      %v1480 = vld [vmem:[%s210 + $0x128] sm:$0xff]
      %v1481 = vld [vmem:[%s210 + $0x130] sm:$0xff]
      %v1482 = vld [vmem:[%s210 + $0x138] sm:$0xff]
      %v1483 = vld [vmem:[%s210 + $0x140] sm:$0xff]
      %v1484 = vld [vmem:[%s210 + $0x148] sm:$0xff]
      %v1485 = vld [vmem:[%s210 + $0x150] sm:$0xff]
      %v1486 = vld [vmem:[%s210 + $0x158] sm:$0xff]
      %v1487 = vld [vmem:[%s210 + $0x160] sm:$0xff]
      %v1488 = vld [vmem:[%s210 + $0x168] sm:$0xff]
      %v1489 = vld [vmem:[%s210 + $0x170] sm:$0xff]
      %v1490 = vld [vmem:[%s210 + $0x178] sm:$0xff]
      %v1491 = vld [vmem:[%s210 + $0x180] sm:$0xff]
      %v1492 = vld [vmem:[%s210 + $0x188] sm:$0xff]
      %v1493 = vld [vmem:[%s210 + $0x190] sm:$0xff]
      %v1494 = vld [vmem:[%s210 + $0x198] sm:$0xff]
      %v1495 = vld [vmem:[%s210 + $0x1a0] sm:$0xff]
      %v1496 = vld [vmem:[%s210 + $0x1a8] sm:$0xff]
      %v1497 = vld [vmem:[%s210 + $0x1b0] sm:$0xff]
      %v1498 = vld [vmem:[%s210 + $0x1b8] sm:$0xff]
      %v1499 = vld [vmem:[%s210 + $0x1c0] sm:$0xff]
      %v1500 = vld [vmem:[%s210 + $0x1c8] sm:$0xff]
      %v1501 = vld [vmem:[%s210 + $0x1d0] sm:$0xff]
      %v1502 = vld [vmem:[%s210 + $0x1d8] sm:$0xff]
      %v1503 = vld [vmem:[%s210 + $0x1e0] sm:$0xff]
      %v1504 = vld [vmem:[%s210 + $0x1e8] sm:$0xff]
      %v1505 = vld [vmem:[%s210 + $0x1f0] sm:$0xff]
      %v1506 = vld [vmem:[%s210 + $0x1f8] sm:$0xff]
      %v1507 = vld [vmem:[%s210 + $0x200] sm:$0xff]
      %v1508 = vld [vmem:[%s210 + $0x208] sm:$0xff]
      %v1509 = vld [vmem:[%s210 + $0x210] sm:$0xff]
      %v1510 = vld [vmem:[%s210 + $0x218] sm:$0xff]
      %v1511 = vld [vmem:[%s210 + $0x220] sm:$0xff]
      %v1512 = vld [vmem:[%s210 + $0x228] sm:$0xff]
      %v1513 = vld [vmem:[%s210 + $0x230] sm:$0xff]
      %v1514 = vld [vmem:[%s210 + $0x238] sm:$0xff]
      %v1515 = vmul.f32 %v579, %v1371
      %v1516 = vmul.f32 %v580, %v1372
      %v1517 = vmul.f32 %v581, %v1373
      %v1518 = vmul.f32 %v582, %v1374
      %v1519 = vmul.f32 %v583, %v1375
      %v1520 = vmul.f32 %v584, %v1376
      %v1521 = vmul.f32 %v585, %v1377
      %v1522 = vmul.f32 %v586, %v1378
      %v1523 = vmul.f32 %v587, %v1379
      %v1524 = vmul.f32 %v588, %v1380
      %v1525 = vmul.f32 %v589, %v1381
      %v1526 = vmul.f32 %v590, %v1382
      %v1527 = vmul.f32 %v591, %v1383
      %v1528 = vmul.f32 %v592, %v1384
      %v1529 = vmul.f32 %v593, %v1385
      %v1530 = vmul.f32 %v594, %v1386
      %v1531 = vmul.f32 %v595, %v1387
      %v1532 = vmul.f32 %v596, %v1388
      %v1533 = vmul.f32 %v597, %v1389
      %v1534 = vmul.f32 %v598, %v1390
      %v1535 = vmul.f32 %v599, %v1391
      %v1536 = vmul.f32 %v600, %v1392
      %v1537 = vmul.f32 %v601, %v1393
      %v1538 = vmul.f32 %v602, %v1394
      %v1539 = vmul.f32 %v603, %v1395
      %v1540 = vmul.f32 %v604, %v1396
      %v1541 = vmul.f32 %v605, %v1397
      %v1542 = vmul.f32 %v606, %v1398
      %v1543 = vmul.f32 %v607, %v1399
      %v1544 = vmul.f32 %v608, %v1400
      %v1545 = vmul.f32 %v609, %v1401
      %v1546 = vmul.f32 %v610, %v1402
      %v1547 = vmul.f32 %v611, %v1403
      %v1548 = vmul.f32 %v612, %v1404
      %v1549 = vmul.f32 %v613, %v1405
      %v1550 = vmul.f32 %v614, %v1406
      %v1551 = vmul.f32 %v615, %v1407
      %v1552 = vmul.f32 %v616, %v1408
      %v1553 = vmul.f32 %v617, %v1409
      %v1554 = vmul.f32 %v618, %v1410
      %v1555 = vmul.f32 %v619, %v1411
      %v1556 = vmul.f32 %v620, %v1412
      %v1557 = vmul.f32 %v621, %v1413
      %v1558 = vmul.f32 %v622, %v1414
      %v1559 = vmul.f32 %v623, %v1415
      %v1560 = vmul.f32 %v624, %v1416
      %v1561 = vmul.f32 %v625, %v1417
      %v1562 = vmul.f32 %v626, %v1418
      %v1563 = vmul.f32 %v627, %v1419
      %v1564 = vmul.f32 %v628, %v1420
      %v1565 = vmul.f32 %v629, %v1421
      %v1566 = vmul.f32 %v630, %v1422
      %v1567 = vmul.f32 %v631, %v1423
      %v1568 = vmul.f32 %v632, %v1424
      %v1569 = vmul.f32 %v633, %v1425
      %v1570 = vmul.f32 %v634, %v1426
      %v1571 = vmul.f32 %v635, %v1427
      %v1572 = vmul.f32 %v636, %v1428
      %v1573 = vmul.f32 %v637, %v1429
      %v1574 = vmul.f32 %v638, %v1430
      %v1575 = vmul.f32 %v639, %v1431
      %v1576 = vmul.f32 %v640, %v1432
      %v1577 = vmul.f32 %v641, %v1433
      %v1578 = vmul.f32 %v642, %v1434
      %v1579 = vmul.f32 %v643, %v1435
      %v1580 = vmul.f32 %v644, %v1436
      %v1581 = vmul.f32 %v645, %v1437
      %v1582 = vmul.f32 %v646, %v1438
      %v1583 = vmul.f32 %v647, %v1439
      %v1584 = vmul.f32 %v648, %v1440
      %v1585 = vmul.f32 %v649, %v1441
      %v1586 = vmul.f32 %v650, %v1442
      %v1587 = vsub.f32 %v1443, %v1515
      %v1588 = vsub.f32 %v1444, %v1516
      %v1589 = vsub.f32 %v1445, %v1517
      %v1590 = vsub.f32 %v1446, %v1518
      %v1591 = vsub.f32 %v1447, %v1519
      %v1592 = vsub.f32 %v1448, %v1520
      %v1593 = vsub.f32 %v1449, %v1521
      %v1594 = vsub.f32 %v1450, %v1522
      %v1595 = vsub.f32 %v1451, %v1523
      %v1596 = vsub.f32 %v1452, %v1524
      %v1597 = vsub.f32 %v1453, %v1525
      %v1598 = vsub.f32 %v1454, %v1526
      %v1599 = vsub.f32 %v1455, %v1527
      %v1600 = vsub.f32 %v1456, %v1528
      %v1601 = vsub.f32 %v1457, %v1529
      %v1602 = vsub.f32 %v1458, %v1530
      %v1603 = vsub.f32 %v1459, %v1531
      %v1604 = vsub.f32 %v1460, %v1532
      %v1605 = vsub.f32 %v1461, %v1533
      %v1606 = vsub.f32 %v1462, %v1534
      %v1607 = vsub.f32 %v1463, %v1535
      %v1608 = vsub.f32 %v1464, %v1536
      %v1609 = vsub.f32 %v1465, %v1537
      %v1610 = vsub.f32 %v1466, %v1538
      %v1611 = vsub.f32 %v1467, %v1539
      %v1612 = vsub.f32 %v1468, %v1540
      %v1613 = vsub.f32 %v1469, %v1541
      %v1614 = vsub.f32 %v1470, %v1542
      %v1615 = vsub.f32 %v1471, %v1543
      %v1616 = vsub.f32 %v1472, %v1544
      %v1617 = vsub.f32 %v1473, %v1545
      %v1618 = vsub.f32 %v1474, %v1546
      %v1619 = vsub.f32 %v1475, %v1547
      %v1620 = vsub.f32 %v1476, %v1548
      %v1621 = vsub.f32 %v1477, %v1549
      %v1622 = vsub.f32 %v1478, %v1550
      %v1623 = vsub.f32 %v1479, %v1551
      %v1624 = vsub.f32 %v1480, %v1552
      %v1625 = vsub.f32 %v1481, %v1553
      %v1626 = vsub.f32 %v1482, %v1554
      %v1627 = vsub.f32 %v1483, %v1555
      %v1628 = vsub.f32 %v1484, %v1556
      %v1629 = vsub.f32 %v1485, %v1557
      %v1630 = vsub.f32 %v1486, %v1558
      %v1631 = vsub.f32 %v1487, %v1559
      %v1632 = vsub.f32 %v1488, %v1560
      %v1633 = vsub.f32 %v1489, %v1561
      %v1634 = vsub.f32 %v1490, %v1562
      %v1635 = vsub.f32 %v1491, %v1563
      %v1636 = vsub.f32 %v1492, %v1564
      %v1637 = vsub.f32 %v1493, %v1565
      %v1638 = vsub.f32 %v1494, %v1566
      %v1639 = vsub.f32 %v1495, %v1567
      %v1640 = vsub.f32 %v1496, %v1568
      %v1641 = vsub.f32 %v1497, %v1569
      %v1642 = vsub.f32 %v1498, %v1570
      %v1643 = vsub.f32 %v1499, %v1571
      %v1644 = vsub.f32 %v1500, %v1572
      %v1645 = vsub.f32 %v1501, %v1573
      %v1646 = vsub.f32 %v1502, %v1574
      %v1647 = vsub.f32 %v1503, %v1575
      %v1648 = vsub.f32 %v1504, %v1576
      %v1649 = vsub.f32 %v1505, %v1577
      %v1650 = vsub.f32 %v1506, %v1578
      %v1651 = vsub.f32 %v1507, %v1579
      %v1652 = vsub.f32 %v1508, %v1580
      %v1653 = vsub.f32 %v1509, %v1581
      %v1654 = vsub.f32 %v1510, %v1582
      %v1655 = vsub.f32 %v1511, %v1583
      %v1656 = vsub.f32 %v1512, %v1584
      %v1657 = vsub.f32 %v1513, %v1585
      %v1658 = vsub.f32 %v1514, %v1586
      %1660 = vset.pattern.permute.xlu0 0
      %1661 = vperm.xlu0 %1660, %v1371
      %v1662 = vpop.permute.xlu0 %1661
      %1665 = vset.pattern.permute.xlu0 0
      %1666 = vperm.xlu0 %1665, %v1372
      %v1667 = vpop.permute.xlu0 %1666
      %1670 = vset.pattern.permute.xlu0 0
      %1671 = vperm.xlu0 %1670, %v1373
      %v1672 = vpop.permute.xlu0 %1671
      %1675 = vset.pattern.permute.xlu0 0
      %1676 = vperm.xlu0 %1675, %v1374
      %v1677 = vpop.permute.xlu0 %1676
      %1680 = vset.pattern.permute.xlu0 0
      %1681 = vperm.xlu0 %1680, %v1375
      %v1682 = vpop.permute.xlu0 %1681
      %1685 = vset.pattern.permute.xlu0 0
      %1686 = vperm.xlu0 %1685, %v1376
      %v1687 = vpop.permute.xlu0 %1686
      %1690 = vset.pattern.permute.xlu0 0
      %1691 = vperm.xlu0 %1690, %v1377
      %v1692 = vpop.permute.xlu0 %1691
      %1695 = vset.pattern.permute.xlu0 0
      %1696 = vperm.xlu0 %1695, %v1378
      %v1697 = vpop.permute.xlu0 %1696
      %1700 = vset.pattern.permute.xlu0 0
      %1701 = vperm.xlu0 %1700, %v1379
      %v1702 = vpop.permute.xlu0 %1701
      %1705 = vset.pattern.permute.xlu0 0
      %1706 = vperm.xlu0 %1705, %v1380
      %v1707 = vpop.permute.xlu0 %1706
      %1710 = vset.pattern.permute.xlu0 0
      %1711 = vperm.xlu0 %1710, %v1381
      %v1712 = vpop.permute.xlu0 %1711
      %1715 = vset.pattern.permute.xlu0 0
      %1716 = vperm.xlu0 %1715, %v1382
      %v1717 = vpop.permute.xlu0 %1716
      %1720 = vset.pattern.permute.xlu0 0
      %1721 = vperm.xlu0 %1720, %v1383
      %v1722 = vpop.permute.xlu0 %1721
      %1725 = vset.pattern.permute.xlu0 0
      %1726 = vperm.xlu0 %1725, %v1384
      %v1727 = vpop.permute.xlu0 %1726
      %1730 = vset.pattern.permute.xlu0 0
      %1731 = vperm.xlu0 %1730, %v1385
      %v1732 = vpop.permute.xlu0 %1731
      %1735 = vset.pattern.permute.xlu0 0
      %1736 = vperm.xlu0 %1735, %v1386
      %v1737 = vpop.permute.xlu0 %1736
      %1740 = vset.pattern.permute.xlu0 0
      %1741 = vperm.xlu0 %1740, %v1387
      %v1742 = vpop.permute.xlu0 %1741
      %1745 = vset.pattern.permute.xlu0 0
      %1746 = vperm.xlu0 %1745, %v1388
      %v1747 = vpop.permute.xlu0 %1746
      %1750 = vset.pattern.permute.xlu0 0
      %1751 = vperm.xlu0 %1750, %v1389
      %v1752 = vpop.permute.xlu0 %1751
      %1755 = vset.pattern.permute.xlu0 0
      %1756 = vperm.xlu0 %1755, %v1390
      %v1757 = vpop.permute.xlu0 %1756
      %1760 = vset.pattern.permute.xlu0 0
      %1761 = vperm.xlu0 %1760, %v1391
      %v1762 = vpop.permute.xlu0 %1761
      %1765 = vset.pattern.permute.xlu0 0
      %1766 = vperm.xlu0 %1765, %v1392
      %v1767 = vpop.permute.xlu0 %1766
      %1770 = vset.pattern.permute.xlu0 0
      %1771 = vperm.xlu0 %1770, %v1393
      %v1772 = vpop.permute.xlu0 %1771
      %1775 = vset.pattern.permute.xlu0 0
      %1776 = vperm.xlu0 %1775, %v1394
      %v1777 = vpop.permute.xlu0 %1776
      %1780 = vset.pattern.permute.xlu0 0
      %1781 = vperm.xlu0 %1780, %v1395
      %v1782 = vpop.permute.xlu0 %1781
      %1785 = vset.pattern.permute.xlu0 0
      %1786 = vperm.xlu0 %1785, %v1396
      %v1787 = vpop.permute.xlu0 %1786
      %1790 = vset.pattern.permute.xlu0 0
      %1791 = vperm.xlu0 %1790, %v1397
      %v1792 = vpop.permute.xlu0 %1791
      %1795 = vset.pattern.permute.xlu0 0
      %1796 = vperm.xlu0 %1795, %v1398
      %v1797 = vpop.permute.xlu0 %1796
      %1800 = vset.pattern.permute.xlu0 0
      %1801 = vperm.xlu0 %1800, %v1399
      %v1802 = vpop.permute.xlu0 %1801
      %1805 = vset.pattern.permute.xlu0 0
      %1806 = vperm.xlu0 %1805, %v1400
      %v1807 = vpop.permute.xlu0 %1806
      %1810 = vset.pattern.permute.xlu0 0
      %1811 = vperm.xlu0 %1810, %v1401
      %v1812 = vpop.permute.xlu0 %1811
      %1815 = vset.pattern.permute.xlu0 0
      %1816 = vperm.xlu0 %1815, %v1402
      %v1817 = vpop.permute.xlu0 %1816
      %1820 = vset.pattern.permute.xlu0 0
      %1821 = vperm.xlu0 %1820, %v1403
      %v1822 = vpop.permute.xlu0 %1821
      %1825 = vset.pattern.permute.xlu0 0
      %1826 = vperm.xlu0 %1825, %v1404
      %v1827 = vpop.permute.xlu0 %1826
      %1830 = vset.pattern.permute.xlu0 0
      %1831 = vperm.xlu0 %1830, %v1405
      %v1832 = vpop.permute.xlu0 %1831
      %1835 = vset.pattern.permute.xlu0 0
      %1836 = vperm.xlu0 %1835, %v1406
      %v1837 = vpop.permute.xlu0 %1836
      %1840 = vset.pattern.permute.xlu0 0
      %1841 = vperm.xlu0 %1840, %v1407
      %v1842 = vpop.permute.xlu0 %1841
      %1845 = vset.pattern.permute.xlu0 0
      %1846 = vperm.xlu0 %1845, %v1408
      %v1847 = vpop.permute.xlu0 %1846
      %1850 = vset.pattern.permute.xlu0 0
      %1851 = vperm.xlu0 %1850, %v1409
      %v1852 = vpop.permute.xlu0 %1851
      %1855 = vset.pattern.permute.xlu0 0
      %1856 = vperm.xlu0 %1855, %v1410
      %v1857 = vpop.permute.xlu0 %1856
      %1860 = vset.pattern.permute.xlu0 0
      %1861 = vperm.xlu0 %1860, %v1411
      %v1862 = vpop.permute.xlu0 %1861
      %1865 = vset.pattern.permute.xlu0 0
      %1866 = vperm.xlu0 %1865, %v1412
      %v1867 = vpop.permute.xlu0 %1866
      %1870 = vset.pattern.permute.xlu0 0
      %1871 = vperm.xlu0 %1870, %v1413
      %v1872 = vpop.permute.xlu0 %1871
      %1875 = vset.pattern.permute.xlu0 0
      %1876 = vperm.xlu0 %1875, %v1414
      %v1877 = vpop.permute.xlu0 %1876
      %1880 = vset.pattern.permute.xlu0 0
      %1881 = vperm.xlu0 %1880, %v1415
      %v1882 = vpop.permute.xlu0 %1881
      %1885 = vset.pattern.permute.xlu0 0
      %1886 = vperm.xlu0 %1885, %v1416
      %v1887 = vpop.permute.xlu0 %1886
      %1890 = vset.pattern.permute.xlu0 0
      %1891 = vperm.xlu0 %1890, %v1417
      %v1892 = vpop.permute.xlu0 %1891
      %1895 = vset.pattern.permute.xlu0 0
      %1896 = vperm.xlu0 %1895, %v1418
      %v1897 = vpop.permute.xlu0 %1896
      %1900 = vset.pattern.permute.xlu0 0
      %1901 = vperm.xlu0 %1900, %v1419
      %v1902 = vpop.permute.xlu0 %1901
      %1905 = vset.pattern.permute.xlu0 0
      %1906 = vperm.xlu0 %1905, %v1420
      %v1907 = vpop.permute.xlu0 %1906
      %1910 = vset.pattern.permute.xlu0 0
      %1911 = vperm.xlu0 %1910, %v1421
      %v1912 = vpop.permute.xlu0 %1911
      %1915 = vset.pattern.permute.xlu0 0
      %1916 = vperm.xlu0 %1915, %v1422
      %v1917 = vpop.permute.xlu0 %1916
      %1920 = vset.pattern.permute.xlu0 0
      %1921 = vperm.xlu0 %1920, %v1423
      %v1922 = vpop.permute.xlu0 %1921
      %1925 = vset.pattern.permute.xlu0 0
      %1926 = vperm.xlu0 %1925, %v1424
      %v1927 = vpop.permute.xlu0 %1926
      %1930 = vset.pattern.permute.xlu0 0
      %1931 = vperm.xlu0 %1930, %v1425
      %v1932 = vpop.permute.xlu0 %1931
      %1935 = vset.pattern.permute.xlu0 0
      %1936 = vperm.xlu0 %1935, %v1426
      %v1937 = vpop.permute.xlu0 %1936
      %1940 = vset.pattern.permute.xlu0 0
      %1941 = vperm.xlu0 %1940, %v1427
      %v1942 = vpop.permute.xlu0 %1941
      %1945 = vset.pattern.permute.xlu0 0
      %1946 = vperm.xlu0 %1945, %v1428
      %v1947 = vpop.permute.xlu0 %1946
      %1950 = vset.pattern.permute.xlu0 0
      %1951 = vperm.xlu0 %1950, %v1429
      %v1952 = vpop.permute.xlu0 %1951
      %1955 = vset.pattern.permute.xlu0 0
      %1956 = vperm.xlu0 %1955, %v1430
      %v1957 = vpop.permute.xlu0 %1956
      %1960 = vset.pattern.permute.xlu0 0
      %1961 = vperm.xlu0 %1960, %v1431
      %v1962 = vpop.permute.xlu0 %1961
      %1965 = vset.pattern.permute.xlu0 0
      %1966 = vperm.xlu0 %1965, %v1432
      %v1967 = vpop.permute.xlu0 %1966
      %1970 = vset.pattern.permute.xlu0 0
      %1971 = vperm.xlu0 %1970, %v1433
      %v1972 = vpop.permute.xlu0 %1971
      %1975 = vset.pattern.permute.xlu0 0
      %1976 = vperm.xlu0 %1975, %v1434
      %v1977 = vpop.permute.xlu0 %1976
      %1980 = vset.pattern.permute.xlu0 0
      %1981 = vperm.xlu0 %1980, %v1435
      %v1982 = vpop.permute.xlu0 %1981
      %1985 = vset.pattern.permute.xlu0 0
      %1986 = vperm.xlu0 %1985, %v1436
      %v1987 = vpop.permute.xlu0 %1986
      %1990 = vset.pattern.permute.xlu0 0
      %1991 = vperm.xlu0 %1990, %v1437
      %v1992 = vpop.permute.xlu0 %1991
      %1995 = vset.pattern.permute.xlu0 0
      %1996 = vperm.xlu0 %1995, %v1438
      %v1997 = vpop.permute.xlu0 %1996
      %2000 = vset.pattern.permute.xlu0 0
      %2001 = vperm.xlu0 %2000, %v1439
      %v2002 = vpop.permute.xlu0 %2001
      %2005 = vset.pattern.permute.xlu0 0
      %2006 = vperm.xlu0 %2005, %v1440
      %v2007 = vpop.permute.xlu0 %2006
      %2010 = vset.pattern.permute.xlu0 0
      %2011 = vperm.xlu0 %2010, %v1441
      %v2012 = vpop.permute.xlu0 %2011
      %2015 = vset.pattern.permute.xlu0 0
      %2016 = vperm.xlu0 %2015, %v1442
      %v2017 = vpop.permute.xlu0 %2016
      %v2019 = vmul.f32 %v218, %v1662
      %v2020 = vmul.f32 %v219, %v1667
      %v2021 = vmul.f32 %v220, %v1672
      %v2022 = vmul.f32 %v221, %v1677
      %v2023 = vmul.f32 %v222, %v1682
      %v2024 = vmul.f32 %v223, %v1687
      %v2025 = vmul.f32 %v224, %v1692
      %v2026 = vmul.f32 %v225, %v1697
      %v2027 = vmul.f32 %v226, %v1702
      %v2028 = vmul.f32 %v227, %v1707
      %v2029 = vmul.f32 %v228, %v1712
      %v2030 = vmul.f32 %v229, %v1717
      %v2031 = vmul.f32 %v230, %v1722
      %v2032 = vmul.f32 %v231, %v1727
      %v2033 = vmul.f32 %v232, %v1732
      %v2034 = vmul.f32 %v233, %v1737
      %v2035 = vmul.f32 %v234, %v1742
      %v2036 = vmul.f32 %v235, %v1747
      %v2037 = vmul.f32 %v236, %v1752
      %v2038 = vmul.f32 %v237, %v1757
      %v2039 = vmul.f32 %v238, %v1762
      %v2040 = vmul.f32 %v239, %v1767
      %v2041 = vmul.f32 %v240, %v1772
      %v2042 = vmul.f32 %v241, %v1777
      %v2043 = vmul.f32 %v242, %v1782
      %v2044 = vmul.f32 %v243, %v1787
      %v2045 = vmul.f32 %v244, %v1792
      %v2046 = vmul.f32 %v245, %v1797
      %v2047 = vmul.f32 %v246, %v1802
      %v2048 = vmul.f32 %v247, %v1807
      %v2049 = vmul.f32 %v248, %v1812
      %v2050 = vmul.f32 %v249, %v1817
      %v2051 = vmul.f32 %v250, %v1822
      %v2052 = vmul.f32 %v251, %v1827
      %v2053 = vmul.f32 %v252, %v1832
      %v2054 = vmul.f32 %v253, %v1837
      %v2055 = vmul.f32 %v254, %v1842
      %v2056 = vmul.f32 %v255, %v1847
      %v2057 = vmul.f32 %v256, %v1852
      %v2058 = vmul.f32 %v257, %v1857
      %v2059 = vmul.f32 %v258, %v1862
      %v2060 = vmul.f32 %v259, %v1867
      %v2061 = vmul.f32 %v260, %v1872
      %v2062 = vmul.f32 %v261, %v1877
      %v2063 = vmul.f32 %v262, %v1882
      %v2064 = vmul.f32 %v263, %v1887
      %v2065 = vmul.f32 %v264, %v1892
      %v2066 = vmul.f32 %v265, %v1897
      %v2067 = vmul.f32 %v266, %v1902
      %v2068 = vmul.f32 %v267, %v1907
      %v2069 = vmul.f32 %v268, %v1912
      %v2070 = vmul.f32 %v269, %v1917
      %v2071 = vmul.f32 %v270, %v1922
      %v2072 = vmul.f32 %v271, %v1927
      %v2073 = vmul.f32 %v272, %v1932
      %v2074 = vmul.f32 %v273, %v1937
      %v2075 = vmul.f32 %v274, %v1942
      %v2076 = vmul.f32 %v275, %v1947
      %v2077 = vmul.f32 %v276, %v1952
      %v2078 = vmul.f32 %v277, %v1957
      %v2079 = vmul.f32 %v278, %v1962
      %v2080 = vmul.f32 %v279, %v1967
      %v2081 = vmul.f32 %v280, %v1972
      %v2082 = vmul.f32 %v281, %v1977
      %v2083 = vmul.f32 %v282, %v1982
      %v2084 = vmul.f32 %v283, %v1987
      %v2085 = vmul.f32 %v284, %v1992
      %v2086 = vmul.f32 %v285, %v1997
      %v2087 = vmul.f32 %v286, %v2002
      %v2088 = vmul.f32 %v287, %v2007
      %v2089 = vmul.f32 %v288, %v2012
      %v2090 = vmul.f32 %v289, %v2017
      %2092 = vset.pattern.permute.xlu0 0
      %2093 = vperm.xlu0 %2092, %v1587
      %v2094 = vpop.permute.xlu0 %2093
      %2097 = vset.pattern.permute.xlu0 0
      %2098 = vperm.xlu0 %2097, %v1588
      %v2099 = vpop.permute.xlu0 %2098
      %2102 = vset.pattern.permute.xlu0 0
      %2103 = vperm.xlu0 %2102, %v1589
      %v2104 = vpop.permute.xlu0 %2103
      %2107 = vset.pattern.permute.xlu0 0
      %2108 = vperm.xlu0 %2107, %v1590
      %v2109 = vpop.permute.xlu0 %2108
      %2112 = vset.pattern.permute.xlu0 0
      %2113 = vperm.xlu0 %2112, %v1591
      %v2114 = vpop.permute.xlu0 %2113
      %2117 = vset.pattern.permute.xlu0 0
      %2118 = vperm.xlu0 %2117, %v1592
      %v2119 = vpop.permute.xlu0 %2118
      %2122 = vset.pattern.permute.xlu0 0
      %2123 = vperm.xlu0 %2122, %v1593
      %v2124 = vpop.permute.xlu0 %2123
      %2127 = vset.pattern.permute.xlu0 0
      %2128 = vperm.xlu0 %2127, %v1594
      %v2129 = vpop.permute.xlu0 %2128
      %2132 = vset.pattern.permute.xlu0 0
      %2133 = vperm.xlu0 %2132, %v1595
      %v2134 = vpop.permute.xlu0 %2133
      %2137 = vset.pattern.permute.xlu0 0
      %2138 = vperm.xlu0 %2137, %v1596
      %v2139 = vpop.permute.xlu0 %2138
      %2142 = vset.pattern.permute.xlu0 0
      %2143 = vperm.xlu0 %2142, %v1597
      %v2144 = vpop.permute.xlu0 %2143
      %2147 = vset.pattern.permute.xlu0 0
      %2148 = vperm.xlu0 %2147, %v1598
      %v2149 = vpop.permute.xlu0 %2148
      %2152 = vset.pattern.permute.xlu0 0
      %2153 = vperm.xlu0 %2152, %v1599
      %v2154 = vpop.permute.xlu0 %2153
      %2157 = vset.pattern.permute.xlu0 0
      %2158 = vperm.xlu0 %2157, %v1600
      %v2159 = vpop.permute.xlu0 %2158
      %2162 = vset.pattern.permute.xlu0 0
      %2163 = vperm.xlu0 %2162, %v1601
      %v2164 = vpop.permute.xlu0 %2163
      %2167 = vset.pattern.permute.xlu0 0
      %2168 = vperm.xlu0 %2167, %v1602
      %v2169 = vpop.permute.xlu0 %2168
      %2172 = vset.pattern.permute.xlu0 0
      %2173 = vperm.xlu0 %2172, %v1603
      %v2174 = vpop.permute.xlu0 %2173
      %2177 = vset.pattern.permute.xlu0 0
      %2178 = vperm.xlu0 %2177, %v1604
      %v2179 = vpop.permute.xlu0 %2178
      %2182 = vset.pattern.permute.xlu0 0
      %2183 = vperm.xlu0 %2182, %v1605
      %v2184 = vpop.permute.xlu0 %2183
      %2187 = vset.pattern.permute.xlu0 0
      %2188 = vperm.xlu0 %2187, %v1606
      %v2189 = vpop.permute.xlu0 %2188
      %2192 = vset.pattern.permute.xlu0 0
      %2193 = vperm.xlu0 %2192, %v1607
      %v2194 = vpop.permute.xlu0 %2193
      %2197 = vset.pattern.permute.xlu0 0
      %2198 = vperm.xlu0 %2197, %v1608
      %v2199 = vpop.permute.xlu0 %2198
      %2202 = vset.pattern.permute.xlu0 0
      %2203 = vperm.xlu0 %2202, %v1609
      %v2204 = vpop.permute.xlu0 %2203
      %2207 = vset.pattern.permute.xlu0 0
      %2208 = vperm.xlu0 %2207, %v1610
      %v2209 = vpop.permute.xlu0 %2208
      %2212 = vset.pattern.permute.xlu0 0
      %2213 = vperm.xlu0 %2212, %v1611
      %v2214 = vpop.permute.xlu0 %2213
      %2217 = vset.pattern.permute.xlu0 0
      %2218 = vperm.xlu0 %2217, %v1612
      %v2219 = vpop.permute.xlu0 %2218
      %2222 = vset.pattern.permute.xlu0 0
      %2223 = vperm.xlu0 %2222, %v1613
      %v2224 = vpop.permute.xlu0 %2223
      %2227 = vset.pattern.permute.xlu0 0
      %2228 = vperm.xlu0 %2227, %v1614
      %v2229 = vpop.permute.xlu0 %2228
      %2232 = vset.pattern.permute.xlu0 0
      %2233 = vperm.xlu0 %2232, %v1615
      %v2234 = vpop.permute.xlu0 %2233
      %2237 = vset.pattern.permute.xlu0 0
      %2238 = vperm.xlu0 %2237, %v1616
      %v2239 = vpop.permute.xlu0 %2238
      %2242 = vset.pattern.permute.xlu0 0
      %2243 = vperm.xlu0 %2242, %v1617
      %v2244 = vpop.permute.xlu0 %2243
      %2247 = vset.pattern.permute.xlu0 0
      %2248 = vperm.xlu0 %2247, %v1618
      %v2249 = vpop.permute.xlu0 %2248
      %2252 = vset.pattern.permute.xlu0 0
      %2253 = vperm.xlu0 %2252, %v1619
      %v2254 = vpop.permute.xlu0 %2253
      %2257 = vset.pattern.permute.xlu0 0
      %2258 = vperm.xlu0 %2257, %v1620
      %v2259 = vpop.permute.xlu0 %2258
      %2262 = vset.pattern.permute.xlu0 0
      %2263 = vperm.xlu0 %2262, %v1621
      %v2264 = vpop.permute.xlu0 %2263
      %2267 = vset.pattern.permute.xlu0 0
      %2268 = vperm.xlu0 %2267, %v1622
      %v2269 = vpop.permute.xlu0 %2268
      %2272 = vset.pattern.permute.xlu0 0
      %2273 = vperm.xlu0 %2272, %v1623
      %v2274 = vpop.permute.xlu0 %2273
      %2277 = vset.pattern.permute.xlu0 0
      %2278 = vperm.xlu0 %2277, %v1624
      %v2279 = vpop.permute.xlu0 %2278
      %2282 = vset.pattern.permute.xlu0 0
      %2283 = vperm.xlu0 %2282, %v1625
      %v2284 = vpop.permute.xlu0 %2283
      %2287 = vset.pattern.permute.xlu0 0
      %2288 = vperm.xlu0 %2287, %v1626
      %v2289 = vpop.permute.xlu0 %2288
      %2292 = vset.pattern.permute.xlu0 0
      %2293 = vperm.xlu0 %2292, %v1627
      %v2294 = vpop.permute.xlu0 %2293
      %2297 = vset.pattern.permute.xlu0 0
      %2298 = vperm.xlu0 %2297, %v1628
      %v2299 = vpop.permute.xlu0 %2298
      %2302 = vset.pattern.permute.xlu0 0
      %2303 = vperm.xlu0 %2302, %v1629
      %v2304 = vpop.permute.xlu0 %2303
      %2307 = vset.pattern.permute.xlu0 0
      %2308 = vperm.xlu0 %2307, %v1630
      %v2309 = vpop.permute.xlu0 %2308
      %2312 = vset.pattern.permute.xlu0 0
      %2313 = vperm.xlu0 %2312, %v1631
      %v2314 = vpop.permute.xlu0 %2313
      %2317 = vset.pattern.permute.xlu0 0
      %2318 = vperm.xlu0 %2317, %v1632
      %v2319 = vpop.permute.xlu0 %2318
      %2322 = vset.pattern.permute.xlu0 0
      %2323 = vperm.xlu0 %2322, %v1633
      %v2324 = vpop.permute.xlu0 %2323
      %2327 = vset.pattern.permute.xlu0 0
      %2328 = vperm.xlu0 %2327, %v1634
      %v2329 = vpop.permute.xlu0 %2328
      %2332 = vset.pattern.permute.xlu0 0
      %2333 = vperm.xlu0 %2332, %v1635
      %v2334 = vpop.permute.xlu0 %2333
      %2337 = vset.pattern.permute.xlu0 0
      %2338 = vperm.xlu0 %2337, %v1636
      %v2339 = vpop.permute.xlu0 %2338
      %2342 = vset.pattern.permute.xlu0 0
      %2343 = vperm.xlu0 %2342, %v1637
      %v2344 = vpop.permute.xlu0 %2343
      %2347 = vset.pattern.permute.xlu0 0
      %2348 = vperm.xlu0 %2347, %v1638
      %v2349 = vpop.permute.xlu0 %2348
      %2352 = vset.pattern.permute.xlu0 0
      %2353 = vperm.xlu0 %2352, %v1639
      %v2354 = vpop.permute.xlu0 %2353
      %2357 = vset.pattern.permute.xlu0 0
      %2358 = vperm.xlu0 %2357, %v1640
      %v2359 = vpop.permute.xlu0 %2358
      %2362 = vset.pattern.permute.xlu0 0
      %2363 = vperm.xlu0 %2362, %v1641
      %v2364 = vpop.permute.xlu0 %2363
      %2367 = vset.pattern.permute.xlu0 0
      %2368 = vperm.xlu0 %2367, %v1642
      %v2369 = vpop.permute.xlu0 %2368
      %2372 = vset.pattern.permute.xlu0 0
      %2373 = vperm.xlu0 %2372, %v1643
      %v2374 = vpop.permute.xlu0 %2373
      %2377 = vset.pattern.permute.xlu0 0
      %2378 = vperm.xlu0 %2377, %v1644
      %v2379 = vpop.permute.xlu0 %2378
      %2382 = vset.pattern.permute.xlu0 0
      %2383 = vperm.xlu0 %2382, %v1645
      %v2384 = vpop.permute.xlu0 %2383
      %2387 = vset.pattern.permute.xlu0 0
      %2388 = vperm.xlu0 %2387, %v1646
      %v2389 = vpop.permute.xlu0 %2388
      %2392 = vset.pattern.permute.xlu0 0
      %2393 = vperm.xlu0 %2392, %v1647
      %v2394 = vpop.permute.xlu0 %2393
      %2397 = vset.pattern.permute.xlu0 0
      %2398 = vperm.xlu0 %2397, %v1648
      %v2399 = vpop.permute.xlu0 %2398
      %2402 = vset.pattern.permute.xlu0 0
      %2403 = vperm.xlu0 %2402, %v1649
      %v2404 = vpop.permute.xlu0 %2403
      %2407 = vset.pattern.permute.xlu0 0
      %2408 = vperm.xlu0 %2407, %v1650
      %v2409 = vpop.permute.xlu0 %2408
      %2412 = vset.pattern.permute.xlu0 0
      %2413 = vperm.xlu0 %2412, %v1651
      %v2414 = vpop.permute.xlu0 %2413
      %2417 = vset.pattern.permute.xlu0 0
      %2418 = vperm.xlu0 %2417, %v1652
      %v2419 = vpop.permute.xlu0 %2418
      %2422 = vset.pattern.permute.xlu0 0
      %2423 = vperm.xlu0 %2422, %v1653
      %v2424 = vpop.permute.xlu0 %2423
      %2427 = vset.pattern.permute.xlu0 0
      %2428 = vperm.xlu0 %2427, %v1654
      %v2429 = vpop.permute.xlu0 %2428
      %2432 = vset.pattern.permute.xlu0 0
      %2433 = vperm.xlu0 %2432, %v1655
      %v2434 = vpop.permute.xlu0 %2433
      %2437 = vset.pattern.permute.xlu0 0
      %2438 = vperm.xlu0 %2437, %v1656
      %v2439 = vpop.permute.xlu0 %2438
      %2442 = vset.pattern.permute.xlu0 0
      %2443 = vperm.xlu0 %2442, %v1657
      %v2444 = vpop.permute.xlu0 %2443
      %2447 = vset.pattern.permute.xlu0 0
      %2448 = vperm.xlu0 %2447, %v1658
      %v2449 = vpop.permute.xlu0 %2448
      %v2451 = vadd.f32 %v2019, %v2094
      %v2452 = vadd.f32 %v2020, %v2099
      %v2453 = vadd.f32 %v2021, %v2104
      %v2454 = vadd.f32 %v2022, %v2109
      %v2455 = vadd.f32 %v2023, %v2114
      %v2456 = vadd.f32 %v2024, %v2119
      %v2457 = vadd.f32 %v2025, %v2124
      %v2458 = vadd.f32 %v2026, %v2129
      %v2459 = vadd.f32 %v2027, %v2134
      %v2460 = vadd.f32 %v2028, %v2139
      %v2461 = vadd.f32 %v2029, %v2144
      %v2462 = vadd.f32 %v2030, %v2149
      %v2463 = vadd.f32 %v2031, %v2154
      %v2464 = vadd.f32 %v2032, %v2159
      %v2465 = vadd.f32 %v2033, %v2164
      %v2466 = vadd.f32 %v2034, %v2169
      %v2467 = vadd.f32 %v2035, %v2174
      %v2468 = vadd.f32 %v2036, %v2179
      %v2469 = vadd.f32 %v2037, %v2184
      %v2470 = vadd.f32 %v2038, %v2189
      %v2471 = vadd.f32 %v2039, %v2194
      %v2472 = vadd.f32 %v2040, %v2199
      %v2473 = vadd.f32 %v2041, %v2204
      %v2474 = vadd.f32 %v2042, %v2209
      %v2475 = vadd.f32 %v2043, %v2214
      %v2476 = vadd.f32 %v2044, %v2219
      %v2477 = vadd.f32 %v2045, %v2224
      %v2478 = vadd.f32 %v2046, %v2229
      %v2479 = vadd.f32 %v2047, %v2234
      %v2480 = vadd.f32 %v2048, %v2239
      %v2481 = vadd.f32 %v2049, %v2244
      %v2482 = vadd.f32 %v2050, %v2249
      %v2483 = vadd.f32 %v2051, %v2254
      %v2484 = vadd.f32 %v2052, %v2259
      %v2485 = vadd.f32 %v2053, %v2264
      %v2486 = vadd.f32 %v2054, %v2269
      %v2487 = vadd.f32 %v2055, %v2274
      %v2488 = vadd.f32 %v2056, %v2279
      %v2489 = vadd.f32 %v2057, %v2284
      %v2490 = vadd.f32 %v2058, %v2289
      %v2491 = vadd.f32 %v2059, %v2294
      %v2492 = vadd.f32 %v2060, %v2299
      %v2493 = vadd.f32 %v2061, %v2304
      %v2494 = vadd.f32 %v2062, %v2309
      %v2495 = vadd.f32 %v2063, %v2314
      %v2496 = vadd.f32 %v2064, %v2319
      %v2497 = vadd.f32 %v2065, %v2324
      %v2498 = vadd.f32 %v2066, %v2329
      %v2499 = vadd.f32 %v2067, %v2334
      %v2500 = vadd.f32 %v2068, %v2339
      %v2501 = vadd.f32 %v2069, %v2344
      %v2502 = vadd.f32 %v2070, %v2349
      %v2503 = vadd.f32 %v2071, %v2354
      %v2504 = vadd.f32 %v2072, %v2359
      %v2505 = vadd.f32 %v2073, %v2364
      %v2506 = vadd.f32 %v2074, %v2369
      %v2507 = vadd.f32 %v2075, %v2374
      %v2508 = vadd.f32 %v2076, %v2379
      %v2509 = vadd.f32 %v2077, %v2384
      %v2510 = vadd.f32 %v2078, %v2389
      %v2511 = vadd.f32 %v2079, %v2394
      %v2512 = vadd.f32 %v2080, %v2399
      %v2513 = vadd.f32 %v2081, %v2404
      %v2514 = vadd.f32 %v2082, %v2409
      %v2515 = vadd.f32 %v2083, %v2414
      %v2516 = vadd.f32 %v2084, %v2419
      %v2517 = vadd.f32 %v2085, %v2424
      %v2518 = vadd.f32 %v2086, %v2429
      %v2519 = vadd.f32 %v2087, %v2434
      %v2520 = vadd.f32 %v2088, %v2439
      %v2521 = vadd.f32 %v2089, %v2444
      %v2522 = vadd.f32 %v2090, %v2449
      %2523 = vst.msk [vmem:[%s216] sm:$0xff] %vm290, %v2451
      %2524 = vst.msk [vmem:[%s216 + $0x8] sm:$0xff] %vm290, %v2452
      %2525 = vst.msk [vmem:[%s216 + $0x10] sm:$0xff] %vm290, %v2453
      %2526 = vst.msk [vmem:[%s216 + $0x18] sm:$0xff] %vm290, %v2454
      %2527 = vst.msk [vmem:[%s216 + $0x20] sm:$0xff] %vm290, %v2455
      %2528 = vst.msk [vmem:[%s216 + $0x28] sm:$0xff] %vm290, %v2456
      %2529 = vst.msk [vmem:[%s216 + $0x30] sm:$0xff] %vm290, %v2457
      %2530 = vst.msk [vmem:[%s216 + $0x38] sm:$0xff] %vm290, %v2458
      %2531 = vst.msk [vmem:[%s216 + $0x40] sm:$0xff] %vm290, %v2459
      %2532 = vst.msk [vmem:[%s216 + $0x48] sm:$0xff] %vm290, %v2460
      %2533 = vst.msk [vmem:[%s216 + $0x50] sm:$0xff] %vm290, %v2461
      %2534 = vst.msk [vmem:[%s216 + $0x58] sm:$0xff] %vm290, %v2462
      %2535 = vst.msk [vmem:[%s216 + $0x60] sm:$0xff] %vm290, %v2463
      %2536 = vst.msk [vmem:[%s216 + $0x68] sm:$0xff] %vm290, %v2464
      %2537 = vst.msk [vmem:[%s216 + $0x70] sm:$0xff] %vm290, %v2465
      %2538 = vst.msk [vmem:[%s216 + $0x78] sm:$0xff] %vm290, %v2466
      %2539 = vst.msk [vmem:[%s216 + $0x80] sm:$0xff] %vm290, %v2467
      %2540 = vst.msk [vmem:[%s216 + $0x88] sm:$0xff] %vm290, %v2468
      %2541 = vst.msk [vmem:[%s216 + $0x90] sm:$0xff] %vm290, %v2469
      %2542 = vst.msk [vmem:[%s216 + $0x98] sm:$0xff] %vm290, %v2470
      %2543 = vst.msk [vmem:[%s216 + $0xa0] sm:$0xff] %vm290, %v2471
      %2544 = vst.msk [vmem:[%s216 + $0xa8] sm:$0xff] %vm290, %v2472
      %2545 = vst.msk [vmem:[%s216 + $0xb0] sm:$0xff] %vm290, %v2473
      %2546 = vst.msk [vmem:[%s216 + $0xb8] sm:$0xff] %vm290, %v2474
      %2547 = vst.msk [vmem:[%s216 + $0xc0] sm:$0xff] %vm290, %v2475
      %2548 = vst.msk [vmem:[%s216 + $0xc8] sm:$0xff] %vm290, %v2476
      %2549 = vst.msk [vmem:[%s216 + $0xd0] sm:$0xff] %vm290, %v2477
      %2550 = vst.msk [vmem:[%s216 + $0xd8] sm:$0xff] %vm290, %v2478
      %2551 = vst.msk [vmem:[%s216 + $0xe0] sm:$0xff] %vm290, %v2479
      %2552 = vst.msk [vmem:[%s216 + $0xe8] sm:$0xff] %vm290, %v2480
      %2553 = vst.msk [vmem:[%s216 + $0xf0] sm:$0xff] %vm290, %v2481
      %2554 = vst.msk [vmem:[%s216 + $0xf8] sm:$0xff] %vm290, %v2482
      %2555 = vst.msk [vmem:[%s216 + $0x100] sm:$0xff] %vm290, %v2483
      %2556 = vst.msk [vmem:[%s216 + $0x108] sm:$0xff] %vm290, %v2484
      %2557 = vst.msk [vmem:[%s216 + $0x110] sm:$0xff] %vm290, %v2485
      %2558 = vst.msk [vmem:[%s216 + $0x118] sm:$0xff] %vm290, %v2486
      %2559 = vst.msk [vmem:[%s216 + $0x120] sm:$0xff] %vm290, %v2487
      %2560 = vst.msk [vmem:[%s216 + $0x128] sm:$0xff] %vm290, %v2488
      %2561 = vst.msk [vmem:[%s216 + $0x130] sm:$0xff] %vm290, %v2489
      %2562 = vst.msk [vmem:[%s216 + $0x138] sm:$0xff] %vm290, %v2490
      %2563 = vst.msk [vmem:[%s216 + $0x140] sm:$0xff] %vm290, %v2491
      %2564 = vst.msk [vmem:[%s216 + $0x148] sm:$0xff] %vm290, %v2492
      %2565 = vst.msk [vmem:[%s216 + $0x150] sm:$0xff] %vm290, %v2493
      %2566 = vst.msk [vmem:[%s216 + $0x158] sm:$0xff] %vm290, %v2494
      %2567 = vst.msk [vmem:[%s216 + $0x160] sm:$0xff] %vm290, %v2495
      %2568 = vst.msk [vmem:[%s216 + $0x168] sm:$0xff] %vm290, %v2496
      %2569 = vst.msk [vmem:[%s216 + $0x170] sm:$0xff] %vm290, %v2497
      %2570 = vst.msk [vmem:[%s216 + $0x178] sm:$0xff] %vm290, %v2498
      %2571 = vst.msk [vmem:[%s216 + $0x180] sm:$0xff] %vm290, %v2499
      %2572 = vst.msk [vmem:[%s216 + $0x188] sm:$0xff] %vm290, %v2500
      %2573 = vst.msk [vmem:[%s216 + $0x190] sm:$0xff] %vm290, %v2501
      %2574 = vst.msk [vmem:[%s216 + $0x198] sm:$0xff] %vm290, %v2502
      %2575 = vst.msk [vmem:[%s216 + $0x1a0] sm:$0xff] %vm290, %v2503
      %2576 = vst.msk [vmem:[%s216 + $0x1a8] sm:$0xff] %vm290, %v2504
      %2577 = vst.msk [vmem:[%s216 + $0x1b0] sm:$0xff] %vm290, %v2505
      %2578 = vst.msk [vmem:[%s216 + $0x1b8] sm:$0xff] %vm290, %v2506
      %2579 = vst.msk [vmem:[%s216 + $0x1c0] sm:$0xff] %vm290, %v2507
      %2580 = vst.msk [vmem:[%s216 + $0x1c8] sm:$0xff] %vm290, %v2508
      %2581 = vst.msk [vmem:[%s216 + $0x1d0] sm:$0xff] %vm290, %v2509
      %2582 = vst.msk [vmem:[%s216 + $0x1d8] sm:$0xff] %vm290, %v2510
      %2583 = vst.msk [vmem:[%s216 + $0x1e0] sm:$0xff] %vm290, %v2511
      %2584 = vst.msk [vmem:[%s216 + $0x1e8] sm:$0xff] %vm290, %v2512
      %2585 = vst.msk [vmem:[%s216 + $0x1f0] sm:$0xff] %vm290, %v2513
      %2586 = vst.msk [vmem:[%s216 + $0x1f8] sm:$0xff] %vm290, %v2514
      %2587 = vst.msk [vmem:[%s216 + $0x200] sm:$0xff] %vm290, %v2515
      %2588 = vst.msk [vmem:[%s216 + $0x208] sm:$0xff] %vm290, %v2516
      %2589 = vst.msk [vmem:[%s216 + $0x210] sm:$0xff] %vm290, %v2517
      %2590 = vst.msk [vmem:[%s216 + $0x218] sm:$0xff] %vm290, %v2518
      %2591 = vst.msk [vmem:[%s216 + $0x220] sm:$0xff] %vm290, %v2519
      %2592 = vst.msk [vmem:[%s216 + $0x228] sm:$0xff] %vm290, %v2520
      %2593 = vst.msk [vmem:[%s216 + $0x230] sm:$0xff] %vm290, %v2521
      %2594 = vst.msk [vmem:[%s216 + $0x238] sm:$0xff] %vm290, %v2522
      %s2595 = smul.u32 72, %s14
      %p2596 = scmp.lt.s32.totalorder %s2595, 287
      %s2597 = scalar_select %p2596, %s2595, 287
      %s2598 = smul.addr %s2597, 8
      %s2599 = scalar_lea.vmem %s3, %s2598
      // Predicated region
      $region33: #{tpu_custom_call.1} parent=31 // pred_check
        %p2600 = pneg %p110
      $region34: #{tpu_custom_call.1} parent=31 // pred_check_branch
        %2602 = sbr.rel (%p2600) target = $region36
      $region35: #{tpu_custom_call.1} parent=31 // pred_region
        %s2603 = smul.u32 72, %s14
      $region36: #{tpu_custom_call.1} parent=31 // pred_fallthru
        _
    $region32: #{tpu_custom_call.1} parent=5 // pred_fallthru
      _
    %p2604 = scmp.le.s32.totalorder 2, %s9
    // Predicated region
    $region37: #{tpu_custom_call.1} parent=5 // pred_check
      %p2605 = pneg %p2604
    $region38: #{tpu_custom_call.1} parent=5 // pred_check_branch
      %2607 = sbr.rel (%p2605) target = $region40
    $region39: #{tpu_custom_call.1} parent=5 // pred_region
      %s2608 = ssub.s32 %s9, 2
      // Predicated region
      $region41: #{tpu_custom_call.1} parent=39 // pred_check
        %p2609 = pneg %p116
      $region42: #{tpu_custom_call.1} parent=39 // pred_check_branch
        %2611 = sbr.rel (%p2609) target = $region44
      $region43: #{tpu_custom_call.1} parent=39 // pred_region
        %s2612 = smul.u32 72, %s15
        %p2613 = scmp.lt.s32.totalorder %s2612, 287
        %s2614 = scalar_select %p2613, %s2612, 287
        %s2615 = smul.addr %s2614, 8
        %s2616 = scalar_lea.vmem %s3, %s2615
      $region44: #{tpu_custom_call.1} parent=39 // pred_fallthru
        _
    $region40: #{tpu_custom_call.1} parent=5 // pred_fallthru
      _
  $region6: #{tpu_custom_call.1} parent=0 // loop_footer
    %s13 = sadd.s32 1, %s9
  $region7: #{tpu_custom_call.1} parent=0 // loop_footer_branch
    %8 = sbr.rel target = $region3
  $region8: #{tpu_custom_call.1} parent=0 // loop_exit
    _

</llo_original>
